<compile_context>
chip_gen: v7x
topology: tpu7x:2x2x1
jax: 0.10.0
libtpu: 0.0.40
codegen_flags: <defaults>
</compile_context>

<pallas_src>
import math
from functools import partial
from itertools import combinations

import numpy as np
import jax
import jax.numpy as jnp
from jax import lax
from jax.experimental import pallas as pl
from jax.experimental.pallas import tpu as pltpu

LN_EPS = 1e-5
SQRT2 = math.sqrt(2.0)


def _round_up(v: int, m: int) -> int:
    return ((v + m - 1) // m) * m


# ----------------------------------------------------------------------------
# Glue: network (clique complex) construction, mirroring HNN.__init__
# ----------------------------------------------------------------------------
def build_network(n_vertices: int) -> dict:
    """Complete graph on n_vertices: network[k] = all k-cliques as tuples."""
    verts = list(range(n_vertices))
    return {k: [tuple(c) for c in combinations(verts, k)] for k in (1, 2, 3, 4)}


def get_connection(prev_cliques, next_cliques) -> np.ndarray:
    """Mirrors HNN._get_connection. Returns int array [2, N]:
    row 0 = output (next-layer) index, row 1 = input (prev-layer) index."""
    if not prev_cliques or not next_cliques:
        return np.zeros((2, 0), dtype=np.int64)
    if len(prev_cliques[0]) > len(next_cliques[0]):
        return get_connection(next_cliques, prev_cliques)[(1, 0), :]
    prev_index = {c: i for i, c in enumerate(prev_cliques)}
    k = len(prev_cliques[0])
    out_idx, in_idx = [], []
    for j, nxt in enumerate(next_cliques):
        for sub in combinations(nxt, k):
            i = prev_index.get(sub)
            if i is None:
                continue
            out_idx.append(j)
            in_idx.append(i)
    return np.array([out_idx, in_idx], dtype=np.int64)


def connectivity_mask(out_features: int, in_features: int, conn: np.ndarray) -> np.ndarray:
    m = np.zeros((out_features, in_features), dtype=np.float32)
    if conn.shape[1] > 0:
        m[conn[0], conn[1]] = 1.0
    return m


def init_sparse_block(key, in_features: int, out_features: int, mask: np.ndarray):
    """Deterministic init of (masked weight, bias, LN gamma, LN beta)."""
    k_w, k_b = jax.random.split(key, 2)
    bound = 1.0 / math.sqrt(in_features)
    w = jax.random.uniform(k_w, (out_features, in_features), jnp.float32, -bound, bound)
    w = w * jnp.asarray(mask)                      # zero out non-connected entries
    b = jax.random.uniform(k_b, (out_features,), jnp.float32, -bound, bound)
    gamma = jnp.ones((out_features,), jnp.float32)   # nn.LayerNorm default init
    beta = jnp.zeros((out_features,), jnp.float32)
    return w, b, gamma, beta


# ----------------------------------------------------------------------------
# Parameter slab packing: one [R, 128] f32 input instead of 12 small ones.
# Per block (row_off .. row_off+out_f): lanes [0:in_f] = W, lanes
# [in_f : in_f+3] = (bias, gamma, beta).  Row offsets are 8-aligned.
# ----------------------------------------------------------------------------
def pack_params(params):
    blocks, layout = [], []
    row_off = 0
    for (w, b, g, be) in params:
        out_f, in_f = int(w.shape[0]), int(w.shape[1])
        rows = _round_up(out_f, 8)
        blk = jnp.zeros((rows, 128), jnp.float32)
        blk = blk.at[:out_f, :in_f].set(w)
        blk = blk.at[:out_f, in_f].set(b)
        blk = blk.at[:out_f, in_f + 1].set(g)
        blk = blk.at[:out_f, in_f + 2].set(be)
        blocks.append(blk)
        layout.append((row_off, out_f, in_f))
        row_off += rows
    slab = jnp.concatenate(blocks, axis=0)         # [R_total, 128], R_total % 8 == 0
    return slab, tuple(layout)


# ----------------------------------------------------------------------------
# Pallas kernel: fused HNN forward for one lane tile of rows
# ----------------------------------------------------------------------------
def hnn_kernel(x_ref, slab_ref, o_ref, *, layout):
    x = x_ref[...]                                 # [tm, Q] row-major input tile

    def block(h, idx, h_row_major=False):
        """sparse-linear (masked dense matmul) -> LayerNorm -> exact GELU.
        Activations are feature-major: h is [in_f, tm] (or [tm, in_f] for the
        raw input tile); result is [out_f, tm]."""
        row, out_f, in_f = layout[idx]
        w = slab_ref[row:row + out_f, 0:in_f]              # [out_f, in_f]
        p = slab_ref[row:row + out_f, in_f:in_f + 3]       # [out_f, 3] = (b, gamma, beta)
        if h_row_major:
            # Contract both minor axes ('od,td->ot'): avoids transposing x.
            y = lax.dot_general(w, h, (((1,), (1,)), ((), ())),
                                preferred_element_type=jnp.float32)
        else:
            y = jnp.dot(w, h, preferred_element_type=jnp.float32)
        y = y + p[:, 0:1]
        # Single-pass LayerNorm statistics over the feature (sublane) axis.
        mu = jnp.mean(y, axis=0, keepdims=True)
        m2 = jnp.mean(y * y, axis=0, keepdims=True)
        var = m2 - mu * mu
        y = (y - mu) * lax.rsqrt(var + LN_EPS)
        y = y * p[:, 1:2] + p[:, 2:3]
        # Exact GELU (nn.GELU approximate='none'); dropout = identity (eval).
        return 0.5 * y * (1.0 + lax.erf(y / SQRT2))

    # Interleave trunk and readout so at most one trunk activation is live.
    x_s1 = block(x, 0, h_row_major=True)           # sl1      [l2, tm]
    acc = block(x_s1, 3)                           # readout1 [l1, tm]
    x_s2 = block(x_s1, 1)                          # sl2      [l3, tm]
    acc = acc + block(x_s2, 4)                     # readout2
    x_s3 = block(x_s2, 2)                          # sl3      [l4, tm]
    acc = acc + block(x_s3, 5)                     # readout3
    o_ref[...] = acc                               # lane-dense store [Q, tm]


# ----------------------------------------------------------------------------
# Wrapper (fully jitted)
# ----------------------------------------------------------------------------
def _num_tensorcores() -> int:
    """Best-effort count of TensorCores per chip (for the grid heuristic)."""
    try:
        kind = (getattr(jax.devices()[0], "device_kind", "") or "").lower()
        if "v7" in kind or "v4" in kind or "v5p" in kind:
            return 2
    except Exception:
        pass
    return 1


def _pick_tm(M: int, num_tc: int) -> int:
    """Lane tile over rows. Capped at 256 (vreg live-set), multiple of 8."""
    if num_tc >= 2 and M > 128:
        # Keep >= 2 parallel grid steps so both TensorCores get a tile;
        # fill the 256-wide MXU N axis once M is large enough.
        return 256 if M >= 512 else 128
    # Single TC: one grid step when possible (per-step fixed cost dominates).
    return min(256, _round_up(max(M, 1), 8))


@partial(jax.jit, static_argnames=("layout", "tm"))
def _hnn_forward_impl(x, slab, layout, tm):
    B, P, Q = x.shape
    M = B * P
    xf = x.reshape(M, Q).astype(jnp.float32)       # row-major [M, Q]; no transpose
    Mp = pl.cdiv(M, tm) * tm
    if Mp != M:
        xf = jnp.pad(xf, ((0, Mp - M), (0, 0)))    # zero-pad rows; sliced off below

    out_t = pl.pallas_call(
        partial(hnn_kernel, layout=layout),
        out_shape=jax.ShapeDtypeStruct((Q, Mp), jnp.float32),
        grid=(Mp // tm,),
        in_specs=[
            pl.BlockSpec((tm, Q), lambda i: (i, 0)),          # row-major input tile
            pl.BlockSpec(slab.shape, lambda i: (0, 0)),       # grid-invariant param slab
        ],
        out_specs=pl.BlockSpec((Q, tm), lambda i: (0, i)),    # lane-dense output tile
        compiler_params=pltpu.CompilerParams(dimension_semantics=("parallel",)),
    )(xf, slab)

    # Tiny (Q x M) fused transpose/slice/reshape inside the same jitted program.
    return out_t.T[:M].reshape(B, P, Q)


def hnn_forward(x, params, tm=None):
    """x: [B, P, Q] float32; params: list of 6 (W[out,in], b, gamma, beta)."""
    slab, layout = pack_params(params)
    M = x.shape[0] * x.shape[1]
    if tm is None:
        tm = _pick_tm(M, _num_tensorcores())
    return _hnn_forward_impl(x, slab, layout, int(tm))


# Pure-JAX reference (same math, no Pallas) for correctness checking.
def hnn_reference(x, params):
    def blk(h, p):
        w, b, g, be = p
        y = h @ w.T + b
        mu = y.mean(-1, keepdims=True)
        var = ((y - mu) ** 2).mean(-1, keepdims=True)
        y = (y - mu) / jnp.sqrt(var + LN_EPS)
        y = y * g + be
        return 0.5 * y * (1.0 + lax.erf(y / SQRT2))

    x_s1 = blk(x, params[0])
    x_s2 = blk(x_s1, params[1])
    x_s3 = blk(x_s2, params[2])
    return blk(x_s1, params[3]) + blk(x_s2, params[4]) + blk(x_s3, params[5])


# ----------------------------------------------------------------------------
if __name__ == "__main__":
    # Homological network: complete graph on 8 vertices.
    # l1 = 8 (vertices), l2 = 28 (edges), l3 = 56 (triangles), l4 = 70 (4-cliques)
    network = build_network(8)
    l1, l2, l3, l4 = (len(network[1]), len(network[2]), len(network[3]), len(network[4]))

    masks = [
        connectivity_mask(l2, l1, get_connection(network[1], network[2])),  # sl1
        connectivity_mask(l3, l2, get_connection(network[2], network[3])),  # sl2
        connectivity_mask(l4, l3, get_connection(network[3], network[4])),  # sl3
        connectivity_mask(l1, l2, get_connection(network[2], network[1])),  # readout1
        connectivity_mask(l1, l3, get_connection(network[3], network[1])),  # readout2
        connectivity_mask(l1, l4, get_connection(network[4], network[1])),  # readout3
    ]
    dims = [(l1, l2), (l2, l3), (l3, l4), (l2, l1), (l3, l1), (l4, l1)]

    key = jax.random.PRNGKey(0)
    keys = jax.random.split(key, 7)
    params = [init_sparse_block(keys[i], dims[i][0], dims[i][1], masks[i])
              for i in range(6)]

    # Input: [B, P, Q] with Q == l1.  M = B*P = 256 rows -> one 256-lane tile on
    # single-TC chips, two parallel 128-lane tiles on 2-TC chips.
    B, P = 4, 64
    x = jax.random.normal(keys[6], (B, P, l1), dtype=jnp.float32)

    out = jax.block_until_ready(hnn_forward(x, params))
    ref = hnn_reference(x, params)

    # Kernel uses DEFAULT-precision MXU matmuls (f32 accumulation) vs. the XLA
    # f32 reference through a 6-block LN/GELU chain -> allow bf16-level drift.
    np.testing.assert_allclose(np.asarray(out), np.asarray(ref), rtol=2e-2, atol=2e-2)

    print("KERNEL_OK")
</pallas_src>

<mosaic_0001>
module attributes {stable_mosaic.version = 11 : i64} {
  func.func @hnn_kernel(%arg0: i32, %arg1: memref<256x8xf32, #tpu.memory_space<vmem>>, %arg2: memref<184x128xf32, #tpu.memory_space<vmem>>, %arg3: memref<8x256xf32, #tpu.memory_space<vmem>>) attributes {dimension_semantics = [#tpu.dimension_semantics<parallel>], iteration_bounds = array<i64: 1>, scalar_prefetch = 0 : i64, scratch_operands = 0 : i64, tpu.core_type = #tpu.core_type<tc>, window_params = [{transform_indices = @transform_0, window_bounds = array<i64: 256, 8>}, {pipeline_mode = #tpu.pipeline_mode<synchronous>, transform_indices = @transform_1, window_bounds = array<i64: 184, 128>}, {transform_indices = @transform_2, window_bounds = array<i64: 8, 256>}]} {
    %c0 = arith.constant 0 : index
    %c0_0 = arith.constant 0 : index
    %0 = vector.load %arg1[%c0, %c0_0] : memref<256x8xf32, #tpu.memory_space<vmem>>, vector<256x8xf32>
    %c0_1 = arith.constant 0 : index
    %c0_2 = arith.constant 0 : index
    %1 = vector.load %arg2[%c0_1, %c0_2] : memref<184x128xf32, #tpu.memory_space<vmem>>, vector<28x8xf32>
    %c0_3 = arith.constant 0 : index
    %c8 = arith.constant 8 : index
    %2 = vector.load %arg2[%c0_3, %c8] : memref<184x128xf32, #tpu.memory_space<vmem>>, vector<28x3xf32>
    %cst = arith.constant dense<0.000000e+00> : vector<28x256xf32>
    %3 = tpu.matmul %1, %0, %cst {dimension_numbers = #tpu.dot_dimension_numbers<[1], [1], [0], [0], [0, 0, 1, 0], [], []>} : vector<28x8xf32>, vector<256x8xf32>, vector<28x256xf32> -> vector<28x256xf32>
    %4 = vector.extract_strided_slice %2 {offsets = [0, 0], sizes = [28, 1], strides = [1, 1]} : vector<28x3xf32> to vector<28x1xf32>
    %5 = vector.broadcast %4 : vector<28x1xf32> to vector<28x256xf32>
    %6 = arith.addf %3, %5 : vector<28x256xf32>
    %cst_4 = arith.constant dense<0.000000e+00> : vector<256xf32>
    %7 = vector.multi_reduction <add>, %6, %cst_4 [0] : vector<28x256xf32> to vector<256xf32>
    %8 = vector.shape_cast %7 : vector<256xf32> to vector<1x256xf32>
    %cst_5 = arith.constant 2.800000e+01 : f32
    %9 = vector.broadcast %cst_5 : f32 to vector<1x256xf32>
    %10 = arith.divf %8, %9 : vector<1x256xf32>
    %11 = arith.mulf %6, %6 : vector<28x256xf32>
    %cst_6 = arith.constant dense<0.000000e+00> : vector<256xf32>
    %12 = vector.multi_reduction <add>, %11, %cst_6 [0] : vector<28x256xf32> to vector<256xf32>
    %13 = vector.shape_cast %12 : vector<256xf32> to vector<1x256xf32>
    %cst_7 = arith.constant 2.800000e+01 : f32
    %14 = vector.broadcast %cst_7 : f32 to vector<1x256xf32>
    %15 = arith.divf %13, %14 : vector<1x256xf32>
    %16 = arith.mulf %10, %10 : vector<1x256xf32>
    %17 = arith.subf %15, %16 : vector<1x256xf32>
    %18 = vector.broadcast %10 : vector<1x256xf32> to vector<28x256xf32>
    %19 = arith.subf %6, %18 : vector<28x256xf32>
    %cst_8 = arith.constant 9.99999974E-6 : f32
    %20 = vector.broadcast %cst_8 : f32 to vector<1x256xf32>
    %21 = arith.addf %17, %20 : vector<1x256xf32>
    %22 = math.rsqrt %21 : vector<1x256xf32>
    %23 = vector.broadcast %22 : vector<1x256xf32> to vector<28x256xf32>
    %24 = arith.mulf %19, %23 : vector<28x256xf32>
    %25 = vector.extract_strided_slice %2 {offsets = [0, 1], sizes = [28, 1], strides = [1, 1]} : vector<28x3xf32> to vector<28x1xf32>
    %26 = vector.broadcast %25 : vector<28x1xf32> to vector<28x256xf32>
    %27 = arith.mulf %24, %26 : vector<28x256xf32>
    %28 = vector.extract_strided_slice %2 {offsets = [0, 2], sizes = [28, 1], strides = [1, 1]} : vector<28x3xf32> to vector<28x1xf32>
    %29 = vector.broadcast %28 : vector<28x1xf32> to vector<28x256xf32>
    %30 = arith.addf %27, %29 : vector<28x256xf32>
    %cst_9 = arith.constant 5.000000e-01 : f32
    %31 = vector.broadcast %cst_9 : f32 to vector<28x256xf32>
    %32 = arith.mulf %31, %30 : vector<28x256xf32>
    %cst_10 = arith.constant 1.41421354 : f32
    %33 = vector.broadcast %cst_10 : f32 to vector<28x256xf32>
    %34 = arith.divf %30, %33 : vector<28x256xf32>
    %35 = math.erf %34 : vector<28x256xf32>
    %cst_11 = arith.constant 1.000000e+00 : f32
    %36 = vector.broadcast %cst_11 : f32 to vector<28x256xf32>
    %37 = arith.addf %36, %35 : vector<28x256xf32>
    %38 = arith.mulf %32, %37 : vector<28x256xf32>
    %c160 = arith.constant 160 : index
    %c0_12 = arith.constant 0 : index
    %39 = vector.load %arg2[%c160, %c0_12] : memref<184x128xf32, #tpu.memory_space<vmem>>, vector<8x28xf32>
    %c160_13 = arith.constant 160 : index
    %c28 = arith.constant 28 : index
    %40 = vector.load %arg2[%c160_13, %c28] : memref<184x128xf32, #tpu.memory_space<vmem>>, vector<8x3xf32>
    %cst_14 = arith.constant dense<0.000000e+00> : vector<8x256xf32>
    %41 = tpu.matmul %39, %38, %cst_14 {dimension_numbers = #tpu.dot_dimension_numbers<[1], [0], [0], [1], [0, 0, 1, 1], [], []>} : vector<8x28xf32>, vector<28x256xf32>, vector<8x256xf32> -> vector<8x256xf32>
    %42 = vector.extract_strided_slice %40 {offsets = [0, 0], sizes = [8, 1], strides = [1, 1]} : vector<8x3xf32> to vector<8x1xf32>
    %43 = vector.broadcast %42 : vector<8x1xf32> to vector<8x256xf32>
    %44 = arith.addf %41, %43 : vector<8x256xf32>
    %cst_15 = arith.constant dense<0.000000e+00> : vector<256xf32>
    %45 = vector.multi_reduction <add>, %44, %cst_15 [0] : vector<8x256xf32> to vector<256xf32>
    %46 = vector.shape_cast %45 : vector<256xf32> to vector<1x256xf32>
    %cst_16 = arith.constant 8.000000e+00 : f32
    %47 = vector.broadcast %cst_16 : f32 to vector<1x256xf32>
    %48 = arith.divf %46, %47 : vector<1x256xf32>
    %49 = arith.mulf %44, %44 : vector<8x256xf32>
    %cst_17 = arith.constant dense<0.000000e+00> : vector<256xf32>
    %50 = vector.multi_reduction <add>, %49, %cst_17 [0] : vector<8x256xf32> to vector<256xf32>
    %51 = vector.shape_cast %50 : vector<256xf32> to vector<1x256xf32>
    %cst_18 = arith.constant 8.000000e+00 : f32
    %52 = vector.broadcast %cst_18 : f32 to vector<1x256xf32>
    %53 = arith.divf %51, %52 : vector<1x256xf32>
    %54 = arith.mulf %48, %48 : vector<1x256xf32>
    %55 = arith.subf %53, %54 : vector<1x256xf32>
    %56 = vector.broadcast %48 : vector<1x256xf32> to vector<8x256xf32>
    %57 = arith.subf %44, %56 : vector<8x256xf32>
    %cst_19 = arith.constant 9.99999974E-6 : f32
    %58 = vector.broadcast %cst_19 : f32 to vector<1x256xf32>
    %59 = arith.addf %55, %58 : vector<1x256xf32>
    %60 = math.rsqrt %59 : vector<1x256xf32>
    %61 = vector.broadcast %60 : vector<1x256xf32> to vector<8x256xf32>
    %62 = arith.mulf %57, %61 : vector<8x256xf32>
    %63 = vector.extract_strided_slice %40 {offsets = [0, 1], sizes = [8, 1], strides = [1, 1]} : vector<8x3xf32> to vector<8x1xf32>
    %64 = vector.broadcast %63 : vector<8x1xf32> to vector<8x256xf32>
    %65 = arith.mulf %62, %64 : vector<8x256xf32>
    %66 = vector.extract_strided_slice %40 {offsets = [0, 2], sizes = [8, 1], strides = [1, 1]} : vector<8x3xf32> to vector<8x1xf32>
    %67 = vector.broadcast %66 : vector<8x1xf32> to vector<8x256xf32>
    %68 = arith.addf %65, %67 : vector<8x256xf32>
    %cst_20 = arith.constant 5.000000e-01 : f32
    %69 = vector.broadcast %cst_20 : f32 to vector<8x256xf32>
    %70 = arith.mulf %69, %68 : vector<8x256xf32>
    %cst_21 = arith.constant 1.41421354 : f32
    %71 = vector.broadcast %cst_21 : f32 to vector<8x256xf32>
    %72 = arith.divf %68, %71 : vector<8x256xf32>
    %73 = math.erf %72 : vector<8x256xf32>
    %cst_22 = arith.constant 1.000000e+00 : f32
    %74 = vector.broadcast %cst_22 : f32 to vector<8x256xf32>
    %75 = arith.addf %74, %73 : vector<8x256xf32>
    %76 = arith.mulf %70, %75 : vector<8x256xf32>
    %c32 = arith.constant 32 : index
    %c0_23 = arith.constant 0 : index
    %77 = vector.load %arg2[%c32, %c0_23] : memref<184x128xf32, #tpu.memory_space<vmem>>, vector<56x28xf32>
    %c32_24 = arith.constant 32 : index
    %c28_25 = arith.constant 28 : index
    %78 = vector.load %arg2[%c32_24, %c28_25] : memref<184x128xf32, #tpu.memory_space<vmem>>, vector<56x3xf32>
    %cst_26 = arith.constant dense<0.000000e+00> : vector<56x256xf32>
    %79 = tpu.matmul %77, %38, %cst_26 {dimension_numbers = #tpu.dot_dimension_numbers<[1], [0], [0], [1], [0, 0, 1, 1], [], []>} : vector<56x28xf32>, vector<28x256xf32>, vector<56x256xf32> -> vector<56x256xf32>
    %80 = vector.extract_strided_slice %78 {offsets = [0, 0], sizes = [56, 1], strides = [1, 1]} : vector<56x3xf32> to vector<56x1xf32>
    %81 = vector.broadcast %80 : vector<56x1xf32> to vector<56x256xf32>
    %82 = arith.addf %79, %81 : vector<56x256xf32>
    %cst_27 = arith.constant dense<0.000000e+00> : vector<256xf32>
    %83 = vector.multi_reduction <add>, %82, %cst_27 [0] : vector<56x256xf32> to vector<256xf32>
    %84 = vector.shape_cast %83 : vector<256xf32> to vector<1x256xf32>
    %cst_28 = arith.constant 5.600000e+01 : f32
    %85 = vector.broadcast %cst_28 : f32 to vector<1x256xf32>
    %86 = arith.divf %84, %85 : vector<1x256xf32>
    %87 = arith.mulf %82, %82 : vector<56x256xf32>
    %cst_29 = arith.constant dense<0.000000e+00> : vector<256xf32>
    %88 = vector.multi_reduction <add>, %87, %cst_29 [0] : vector<56x256xf32> to vector<256xf32>
    %89 = vector.shape_cast %88 : vector<256xf32> to vector<1x256xf32>
    %cst_30 = arith.constant 5.600000e+01 : f32
    %90 = vector.broadcast %cst_30 : f32 to vector<1x256xf32>
    %91 = arith.divf %89, %90 : vector<1x256xf32>
    %92 = arith.mulf %86, %86 : vector<1x256xf32>
    %93 = arith.subf %91, %92 : vector<1x256xf32>
    %94 = vector.broadcast %86 : vector<1x256xf32> to vector<56x256xf32>
    %95 = arith.subf %82, %94 : vector<56x256xf32>
    %cst_31 = arith.constant 9.99999974E-6 : f32
    %96 = vector.broadcast %cst_31 : f32 to vector<1x256xf32>
    %97 = arith.addf %93, %96 : vector<1x256xf32>
    %98 = math.rsqrt %97 : vector<1x256xf32>
    %99 = vector.broadcast %98 : vector<1x256xf32> to vector<56x256xf32>
    %100 = arith.mulf %95, %99 : vector<56x256xf32>
    %101 = vector.extract_strided_slice %78 {offsets = [0, 1], sizes = [56, 1], strides = [1, 1]} : vector<56x3xf32> to vector<56x1xf32>
    %102 = vector.broadcast %101 : vector<56x1xf32> to vector<56x256xf32>
    %103 = arith.mulf %100, %102 : vector<56x256xf32>
    %104 = vector.extract_strided_slice %78 {offsets = [0, 2], sizes = [56, 1], strides = [1, 1]} : vector<56x3xf32> to vector<56x1xf32>
    %105 = vector.broadcast %104 : vector<56x1xf32> to vector<56x256xf32>
    %106 = arith.addf %103, %105 : vector<56x256xf32>
    %cst_32 = arith.constant 5.000000e-01 : f32
    %107 = vector.broadcast %cst_32 : f32 to vector<56x256xf32>
    %108 = arith.mulf %107, %106 : vector<56x256xf32>
    %cst_33 = arith.constant 1.41421354 : f32
    %109 = vector.broadcast %cst_33 : f32 to vector<56x256xf32>
    %110 = arith.divf %106, %109 : vector<56x256xf32>
    %111 = math.erf %110 : vector<56x256xf32>
    %cst_34 = arith.constant 1.000000e+00 : f32
    %112 = vector.broadcast %cst_34 : f32 to vector<56x256xf32>
    %113 = arith.addf %112, %111 : vector<56x256xf32>
    %114 = arith.mulf %108, %113 : vector<56x256xf32>
    %c168 = arith.constant 168 : index
    %c0_35 = arith.constant 0 : index
    %115 = vector.load %arg2[%c168, %c0_35] : memref<184x128xf32, #tpu.memory_space<vmem>>, vector<8x56xf32>
    %c168_36 = arith.constant 168 : index
    %c56 = arith.constant 56 : index
    %116 = vector.load %arg2[%c168_36, %c56] : memref<184x128xf32, #tpu.memory_space<vmem>>, vector<8x3xf32>
    %cst_37 = arith.constant dense<0.000000e+00> : vector<8x256xf32>
    %117 = tpu.matmul %115, %114, %cst_37 {dimension_numbers = #tpu.dot_dimension_numbers<[1], [0], [0], [1], [0, 0, 1, 1], [], []>} : vector<8x56xf32>, vector<56x256xf32>, vector<8x256xf32> -> vector<8x256xf32>
    %118 = vector.extract_strided_slice %116 {offsets = [0, 0], sizes = [8, 1], strides = [1, 1]} : vector<8x3xf32> to vector<8x1xf32>
    %119 = vector.broadcast %118 : vector<8x1xf32> to vector<8x256xf32>
    %120 = arith.addf %117, %119 : vector<8x256xf32>
    %cst_38 = arith.constant dense<0.000000e+00> : vector<256xf32>
    %121 = vector.multi_reduction <add>, %120, %cst_38 [0] : vector<8x256xf32> to vector<256xf32>
    %122 = vector.shape_cast %121 : vector<256xf32> to vector<1x256xf32>
    %cst_39 = arith.constant 8.000000e+00 : f32
    %123 = vector.broadcast %cst_39 : f32 to vector<1x256xf32>
    %124 = arith.divf %122, %123 : vector<1x256xf32>
    %125 = arith.mulf %120, %120 : vector<8x256xf32>
    %cst_40 = arith.constant dense<0.000000e+00> : vector<256xf32>
    %126 = vector.multi_reduction <add>, %125, %cst_40 [0] : vector<8x256xf32> to vector<256xf32>
    %127 = vector.shape_cast %126 : vector<256xf32> to vector<1x256xf32>
    %cst_41 = arith.constant 8.000000e+00 : f32
    %128 = vector.broadcast %cst_41 : f32 to vector<1x256xf32>
    %129 = arith.divf %127, %128 : vector<1x256xf32>
    %130 = arith.mulf %124, %124 : vector<1x256xf32>
    %131 = arith.subf %129, %130 : vector<1x256xf32>
    %132 = vector.broadcast %124 : vector<1x256xf32> to vector<8x256xf32>
    %133 = arith.subf %120, %132 : vector<8x256xf32>
    %cst_42 = arith.constant 9.99999974E-6 : f32
    %134 = vector.broadcast %cst_42 : f32 to vector<1x256xf32>
    %135 = arith.addf %131, %134 : vector<1x256xf32>
    %136 = math.rsqrt %135 : vector<1x256xf32>
    %137 = vector.broadcast %136 : vector<1x256xf32> to vector<8x256xf32>
    %138 = arith.mulf %133, %137 : vector<8x256xf32>
    %139 = vector.extract_strided_slice %116 {offsets = [0, 1], sizes = [8, 1], strides = [1, 1]} : vector<8x3xf32> to vector<8x1xf32>
    %140 = vector.broadcast %139 : vector<8x1xf32> to vector<8x256xf32>
    %141 = arith.mulf %138, %140 : vector<8x256xf32>
    %142 = vector.extract_strided_slice %116 {offsets = [0, 2], sizes = [8, 1], strides = [1, 1]} : vector<8x3xf32> to vector<8x1xf32>
    %143 = vector.broadcast %142 : vector<8x1xf32> to vector<8x256xf32>
    %144 = arith.addf %141, %143 : vector<8x256xf32>
    %cst_43 = arith.constant 5.000000e-01 : f32
    %145 = vector.broadcast %cst_43 : f32 to vector<8x256xf32>
    %146 = arith.mulf %145, %144 : vector<8x256xf32>
    %cst_44 = arith.constant 1.41421354 : f32
    %147 = vector.broadcast %cst_44 : f32 to vector<8x256xf32>
    %148 = arith.divf %144, %147 : vector<8x256xf32>
    %149 = math.erf %148 : vector<8x256xf32>
    %cst_45 = arith.constant 1.000000e+00 : f32
    %150 = vector.broadcast %cst_45 : f32 to vector<8x256xf32>
    %151 = arith.addf %150, %149 : vector<8x256xf32>
    %152 = arith.mulf %146, %151 : vector<8x256xf32>
    %153 = arith.addf %76, %152 : vector<8x256xf32>
    %c88 = arith.constant 88 : index
    %c0_46 = arith.constant 0 : index
    %154 = vector.load %arg2[%c88, %c0_46] : memref<184x128xf32, #tpu.memory_space<vmem>>, vector<70x56xf32>
    %c88_47 = arith.constant 88 : index
    %c56_48 = arith.constant 56 : index
    %155 = vector.load %arg2[%c88_47, %c56_48] : memref<184x128xf32, #tpu.memory_space<vmem>>, vector<70x3xf32>
    %cst_49 = arith.constant dense<0.000000e+00> : vector<70x256xf32>
    %156 = tpu.matmul %154, %114, %cst_49 {dimension_numbers = #tpu.dot_dimension_numbers<[1], [0], [0], [1], [0, 0, 1, 1], [], []>} : vector<70x56xf32>, vector<56x256xf32>, vector<70x256xf32> -> vector<70x256xf32>
    %157 = vector.extract_strided_slice %155 {offsets = [0, 0], sizes = [70, 1], strides = [1, 1]} : vector<70x3xf32> to vector<70x1xf32>
    %158 = vector.broadcast %157 : vector<70x1xf32> to vector<70x256xf32>
    %159 = arith.addf %156, %158 : vector<70x256xf32>
    %cst_50 = arith.constant dense<0.000000e+00> : vector<256xf32>
    %160 = vector.multi_reduction <add>, %159, %cst_50 [0] : vector<70x256xf32> to vector<256xf32>
    %161 = vector.shape_cast %160 : vector<256xf32> to vector<1x256xf32>
    %cst_51 = arith.constant 7.000000e+01 : f32
    %162 = vector.broadcast %cst_51 : f32 to vector<1x256xf32>
    %163 = arith.divf %161, %162 : vector<1x256xf32>
    %164 = arith.mulf %159, %159 : vector<70x256xf32>
    %cst_52 = arith.constant dense<0.000000e+00> : vector<256xf32>
    %165 = vector.multi_reduction <add>, %164, %cst_52 [0] : vector<70x256xf32> to vector<256xf32>
    %166 = vector.shape_cast %165 : vector<256xf32> to vector<1x256xf32>
    %cst_53 = arith.constant 7.000000e+01 : f32
    %167 = vector.broadcast %cst_53 : f32 to vector<1x256xf32>
    %168 = arith.divf %166, %167 : vector<1x256xf32>
    %169 = arith.mulf %163, %163 : vector<1x256xf32>
    %170 = arith.subf %168, %169 : vector<1x256xf32>
    %171 = vector.broadcast %163 : vector<1x256xf32> to vector<70x256xf32>
    %172 = arith.subf %159, %171 : vector<70x256xf32>
    %cst_54 = arith.constant 9.99999974E-6 : f32
    %173 = vector.broadcast %cst_54 : f32 to vector<1x256xf32>
    %174 = arith.addf %170, %173 : vector<1x256xf32>
    %175 = math.rsqrt %174 : vector<1x256xf32>
    %176 = vector.broadcast %175 : vector<1x256xf32> to vector<70x256xf32>
    %177 = arith.mulf %172, %176 : vector<70x256xf32>
    %178 = vector.extract_strided_slice %155 {offsets = [0, 1], sizes = [70, 1], strides = [1, 1]} : vector<70x3xf32> to vector<70x1xf32>
    %179 = vector.broadcast %178 : vector<70x1xf32> to vector<70x256xf32>
    %180 = arith.mulf %177, %179 : vector<70x256xf32>
    %181 = vector.extract_strided_slice %155 {offsets = [0, 2], sizes = [70, 1], strides = [1, 1]} : vector<70x3xf32> to vector<70x1xf32>
    %182 = vector.broadcast %181 : vector<70x1xf32> to vector<70x256xf32>
    %183 = arith.addf %180, %182 : vector<70x256xf32>
    %cst_55 = arith.constant 5.000000e-01 : f32
    %184 = vector.broadcast %cst_55 : f32 to vector<70x256xf32>
    %185 = arith.mulf %184, %183 : vector<70x256xf32>
    %cst_56 = arith.constant 1.41421354 : f32
    %186 = vector.broadcast %cst_56 : f32 to vector<70x256xf32>
    %187 = arith.divf %183, %186 : vector<70x256xf32>
    %188 = math.erf %187 : vector<70x256xf32>
    %cst_57 = arith.constant 1.000000e+00 : f32
    %189 = vector.broadcast %cst_57 : f32 to vector<70x256xf32>
    %190 = arith.addf %189, %188 : vector<70x256xf32>
    %191 = arith.mulf %185, %190 : vector<70x256xf32>
    %c176 = arith.constant 176 : index
    %c0_58 = arith.constant 0 : index
    %192 = vector.load %arg2[%c176, %c0_58] : memref<184x128xf32, #tpu.memory_space<vmem>>, vector<8x70xf32>
    %c176_59 = arith.constant 176 : index
    %c70 = arith.constant 70 : index
    %193 = vector.load %arg2[%c176_59, %c70] : memref<184x128xf32, #tpu.memory_space<vmem>>, vector<8x3xf32>
    %cst_60 = arith.constant dense<0.000000e+00> : vector<8x256xf32>
    %194 = tpu.matmul %192, %191, %cst_60 {dimension_numbers = #tpu.dot_dimension_numbers<[1], [0], [0], [1], [0, 0, 1, 1], [], []>} : vector<8x70xf32>, vector<70x256xf32>, vector<8x256xf32> -> vector<8x256xf32>
    %195 = vector.extract_strided_slice %193 {offsets = [0, 0], sizes = [8, 1], strides = [1, 1]} : vector<8x3xf32> to vector<8x1xf32>
    %196 = vector.broadcast %195 : vector<8x1xf32> to vector<8x256xf32>
    %197 = arith.addf %194, %196 : vector<8x256xf32>
    %cst_61 = arith.constant dense<0.000000e+00> : vector<256xf32>
    %198 = vector.multi_reduction <add>, %197, %cst_61 [0] : vector<8x256xf32> to vector<256xf32>
    %199 = vector.shape_cast %198 : vector<256xf32> to vector<1x256xf32>
    %cst_62 = arith.constant 8.000000e+00 : f32
    %200 = vector.broadcast %cst_62 : f32 to vector<1x256xf32>
    %201 = arith.divf %199, %200 : vector<1x256xf32>
    %202 = arith.mulf %197, %197 : vector<8x256xf32>
    %cst_63 = arith.constant dense<0.000000e+00> : vector<256xf32>
    %203 = vector.multi_reduction <add>, %202, %cst_63 [0] : vector<8x256xf32> to vector<256xf32>
    %204 = vector.shape_cast %203 : vector<256xf32> to vector<1x256xf32>
    %cst_64 = arith.constant 8.000000e+00 : f32
    %205 = vector.broadcast %cst_64 : f32 to vector<1x256xf32>
    %206 = arith.divf %204, %205 : vector<1x256xf32>
    %207 = arith.mulf %201, %201 : vector<1x256xf32>
    %208 = arith.subf %206, %207 : vector<1x256xf32>
    %209 = vector.broadcast %201 : vector<1x256xf32> to vector<8x256xf32>
    %210 = arith.subf %197, %209 : vector<8x256xf32>
    %cst_65 = arith.constant 9.99999974E-6 : f32
    %211 = vector.broadcast %cst_65 : f32 to vector<1x256xf32>
    %212 = arith.addf %208, %211 : vector<1x256xf32>
    %213 = math.rsqrt %212 : vector<1x256xf32>
    %214 = vector.broadcast %213 : vector<1x256xf32> to vector<8x256xf32>
    %215 = arith.mulf %210, %214 : vector<8x256xf32>
    %216 = vector.extract_strided_slice %193 {offsets = [0, 1], sizes = [8, 1], strides = [1, 1]} : vector<8x3xf32> to vector<8x1xf32>
    %217 = vector.broadcast %216 : vector<8x1xf32> to vector<8x256xf32>
    %218 = arith.mulf %215, %217 : vector<8x256xf32>
    %219 = vector.extract_strided_slice %193 {offsets = [0, 2], sizes = [8, 1], strides = [1, 1]} : vector<8x3xf32> to vector<8x1xf32>
    %220 = vector.broadcast %219 : vector<8x1xf32> to vector<8x256xf32>
    %221 = arith.addf %218, %220 : vector<8x256xf32>
    %cst_66 = arith.constant 5.000000e-01 : f32
    %222 = vector.broadcast %cst_66 : f32 to vector<8x256xf32>
    %223 = arith.mulf %222, %221 : vector<8x256xf32>
    %cst_67 = arith.constant 1.41421354 : f32
    %224 = vector.broadcast %cst_67 : f32 to vector<8x256xf32>
    %225 = arith.divf %221, %224 : vector<8x256xf32>
    %226 = math.erf %225 : vector<8x256xf32>
    %cst_68 = arith.constant 1.000000e+00 : f32
    %227 = vector.broadcast %cst_68 : f32 to vector<8x256xf32>
    %228 = arith.addf %227, %226 : vector<8x256xf32>
    %229 = arith.mulf %223, %228 : vector<8x256xf32>
    %230 = arith.addf %153, %229 : vector<8x256xf32>
    %c0_69 = arith.constant 0 : index
    %c0_70 = arith.constant 0 : index
    %231 = vector.load %arg3[%c0_69, %c0_70] : memref<8x256xf32, #tpu.memory_space<vmem>>, vector<8x256xf32>
    tpu.vector_store %arg3[%c0_69, %c0_70], %230 {strides = array<i32>} : memref<8x256xf32, #tpu.memory_space<vmem>>, vector<8x256xf32>,
    return
  }
  func.func @transform_0(%arg0: i32) -> (i32, i32) {
    %c0_i32 = arith.constant 0 : i32
    %c0_i32_0 = arith.constant 0 : i32
    return %arg0, %c0_i32 : i32, i32
  }
  func.func @transform_1(%arg0: i32) -> (i32, i32) {
    %c0_i32 = arith.constant 0 : i32
    %c0_i32_0 = arith.constant 0 : i32
    %c0_i32_1 = arith.constant 0 : i32
    return %c0_i32, %c0_i32_0 : i32, i32
  }
  func.func @transform_2(%arg0: i32) -> (i32, i32) {
    %c0_i32 = arith.constant 0 : i32
    %c0_i32_0 = arith.constant 0 : i32
    return %c0_i32, %arg0 : i32, i32
  }
}

</mosaic_0001>

<llo_original>
// kernel: _hnn_forward_impl.1
$region0: #{_hnn_forward_impl.1}
  #allocation0 [shape = 'u32[]', space=smem, size = 0x4, offset = 0x4, fixed_abs, tag = 'smem constant byte address 0x4 - core index']
  #allocation1 [shape = 'u32[144,128]{1,0:T(1,128)}', space=vmem, size = 0x12000, scoped, tag = 'internal scratch']
  %s0 = inlined_call_operand.vmem [shape: f32[256,8], index: 0, kind: input, shape index: {}]
  %s1 = inlined_call_operand.vmem [shape: f32[184,128], index: 1, kind: input, shape index: {}]
  %s2 = inlined_call_operand.vmem [shape: f32[8,256], index: 2, kind: output, shape index: {}]
  %s3 = sld [smem:[#allocation0]]
  $region18: #{_hnn_forward_impl.1} parent=0
    _
  %s5 = ssub.s32 1, %s3
  %s6 = scalar_select 0, %s5, %s3
  // Predicated region
  $region2: #{_hnn_forward_impl.1} parent=0 // pred_check
    _
  $region3: #{_hnn_forward_impl.1} parent=0 // pred_check_branch
    %8 = sbr.rel (0) target = $region5
  $region4: #{_hnn_forward_impl.1} parent=0 // pred_region
    _
  $region5: #{_hnn_forward_impl.1} parent=0 // pred_fallthru
    _
  // Predicated region
  $region6: #{_hnn_forward_impl.1} parent=0 // pred_check
    _
  $region7: #{_hnn_forward_impl.1} parent=0 // pred_check_branch
    %10 = sbr.rel (0) target = $region9
  $region8: #{_hnn_forward_impl.1} parent=0 // pred_region
    _
  $region9: #{_hnn_forward_impl.1} parent=0 // pred_fallthru
    _
  %v11 = vld [vmem:[%s0] sm:$0xff]
  %v12 = vld [vmem:[%s0 + $0x8] sm:$0xff]
  %v13 = vld [vmem:[%s0 + $0x10] sm:$0xff]
  %v14 = vld [vmem:[%s0 + $0x18] sm:$0xff]
  %v15 = vld [vmem:[%s0 + $0x20] sm:$0xff]
  %v16 = vld [vmem:[%s0 + $0x28] sm:$0xff]
  %v17 = vld [vmem:[%s0 + $0x30] sm:$0xff]
  %v18 = vld [vmem:[%s0 + $0x38] sm:$0xff]
  %v19 = vld [vmem:[%s0 + $0x40] sm:$0xff]
  %v20 = vld [vmem:[%s0 + $0x48] sm:$0xff]
  %v21 = vld [vmem:[%s0 + $0x50] sm:$0xff]
  %v22 = vld [vmem:[%s0 + $0x58] sm:$0xff]
  %v23 = vld [vmem:[%s0 + $0x60] sm:$0xff]
  %v24 = vld [vmem:[%s0 + $0x68] sm:$0xff]
  %v25 = vld [vmem:[%s0 + $0x70] sm:$0xff]
  %v26 = vld [vmem:[%s0 + $0x78] sm:$0xff]
  %v27 = vld [vmem:[%s0 + $0x80] sm:$0xff]
  %v28 = vld [vmem:[%s0 + $0x88] sm:$0xff]
  %v29 = vld [vmem:[%s0 + $0x90] sm:$0xff]
  %v30 = vld [vmem:[%s0 + $0x98] sm:$0xff]
  %v31 = vld [vmem:[%s0 + $0xa0] sm:$0xff]
  %v32 = vld [vmem:[%s0 + $0xa8] sm:$0xff]
  %v33 = vld [vmem:[%s0 + $0xb0] sm:$0xff]
  %v34 = vld [vmem:[%s0 + $0xb8] sm:$0xff]
  %v35 = vld [vmem:[%s0 + $0xc0] sm:$0xff]
  %v36 = vld [vmem:[%s0 + $0xc8] sm:$0xff]
  %v37 = vld [vmem:[%s0 + $0xd0] sm:$0xff]
  %v38 = vld [vmem:[%s0 + $0xd8] sm:$0xff]
  %v39 = vld [vmem:[%s0 + $0xe0] sm:$0xff]
  %v40 = vld [vmem:[%s0 + $0xe8] sm:$0xff]
  %v41 = vld [vmem:[%s0 + $0xf0] sm:$0xff]
  %v42 = vld [vmem:[%s0 + $0xf8] sm:$0xff]
  %v43 = vld [vmem:[%s1] sm:$0xff]
  %v44 = vld [vmem:[%s1 + $0x8] sm:$0xff]
  %v45 = vld [vmem:[%s1 + $0x10] sm:$0xff]
  %v46 = vld [vmem:[%s1 + $0x18] sm:$0xf]
  %48 = vset.pattern.permute.xlu0 8
  %49 = vperm.xlu0 %48, %v43
  %v50 = vpop.permute.xlu0 %49
  %53 = vset.pattern.permute.xlu0 8
  %54 = vperm.xlu0 %53, %v44
  %v55 = vpop.permute.xlu0 %54
  %58 = vset.pattern.permute.xlu0 8
  %59 = vperm.xlu0 %58, %v45
  %v60 = vpop.permute.xlu0 %59
  %63 = vset.pattern.permute.xlu0 8
  %64 = vperm.xlu0 %63, %v46
  %v65 = vpop.permute.xlu0 %64
  %vm67 = vcmask 64512
  %v68 = vsel %vm67, %v43, 0
  %v70 = vsel %vm67, %v44, 0
  %v72 = vsel %vm67, %v45, 0
  %v74 = vsel %vm67, %v46, 0
  %v77 = vsel %vm67, %v11, 0
  %v80 = vsel %vm67, %v12, 0
  %v83 = vsel %vm67, %v13, 0
  %v86 = vsel %vm67, %v14, 0
  %v89 = vsel %vm67, %v15, 0
  %v92 = vsel %vm67, %v16, 0
  %v95 = vsel %vm67, %v17, 0
  %v98 = vsel %vm67, %v18, 0
  %v101 = vsel %vm67, %v19, 0
  %v104 = vsel %vm67, %v20, 0
  %v107 = vsel %vm67, %v21, 0
  %v110 = vsel %vm67, %v22, 0
  %v113 = vsel %vm67, %v23, 0
  %v116 = vsel %vm67, %v24, 0
  %v119 = vsel %vm67, %v25, 0
  %v122 = vsel %vm67, %v26, 0
  %v125 = vsel %vm67, %v27, 0
  %v128 = vsel %vm67, %v28, 0
  %v131 = vsel %vm67, %v29, 0
  %v134 = vsel %vm67, %v30, 0
  %v137 = vsel %vm67, %v31, 0
  %v140 = vsel %vm67, %v32, 0
  %v143 = vsel %vm67, %v33, 0
  %v146 = vsel %vm67, %v34, 0
  %v149 = vsel %vm67, %v35, 0
  %v152 = vsel %vm67, %v36, 0
  %v155 = vsel %vm67, %v37, 0
  %v158 = vsel %vm67, %v38, 0
  %v161 = vsel %vm67, %v39, 0
  %v164 = vsel %vm67, %v40, 0
  %v167 = vsel %vm67, %v41, 0
  %v170 = vsel %vm67, %v42, 0
  %172 = vmatprep.subr.mxu0 0.0
  %173 = vmatpush1.xpose.msra.mxu0 %v77
  %174 = vmatprep.subr.mxu0 0.0
  %175 = vmatpush1.xpose.msra.mxu0 %v80
  %176 = vmatprep.subr.mxu0 0.0
  %177 = vmatpush1.xpose.msra.mxu0 %v83
  %178 = vmatprep.subr.mxu0 0.0
  %179 = vmatpush1.xpose.msra.mxu0 %v86
  %180 = vmatprep.subr.mxu0 0.0
  %181 = vmatpush1.xpose.msra.mxu0 %v89
  %182 = vmatprep.subr.mxu0 0.0
  %183 = vmatpush1.xpose.msra.mxu0 %v92
  %184 = vmatprep.subr.mxu0 0.0
  %185 = vmatpush1.xpose.msra.mxu0 %v95
  %186 = vmatprep.subr.mxu0 0.0
  %187 = vmatpush1.xpose.msra.mxu0 %v98
  %188 = vmatprep.subr.mxu0 0.0
  %189 = vmatpush1.xpose.msra.mxu0 %v101
  %190 = vmatprep.subr.mxu0 0.0
  %191 = vmatpush1.xpose.msra.mxu0 %v104
  %192 = vmatprep.subr.mxu0 0.0
  %193 = vmatpush1.xpose.msra.mxu0 %v107
  %194 = vmatprep.subr.mxu0 0.0
  %195 = vmatpush1.xpose.msra.mxu0 %v110
  %196 = vmatprep.subr.mxu0 0.0
  %197 = vmatpush1.xpose.msra.mxu0 %v113
  %198 = vmatprep.subr.mxu0 0.0
  %199 = vmatpush1.xpose.msra.mxu0 %v116
  %200 = vmatprep.subr.mxu0 0.0
  %201 = vmatpush1.xpose.msra.mxu0 %v119
  %202 = vmatprep.subr.mxu0 0.0
  %203 = vmatpush1.xpose.msra.mxu0 %v122
  %204 = vmatprep.subr.mxu0 0.0
  %205 = vmatpush1.xpose.msra.mxu0 %v125
  %206 = vmatprep.subr.mxu0 0.0
  %207 = vmatpush1.xpose.msra.mxu0 %v128
  %208 = vmatprep.subr.mxu0 0.0
  %209 = vmatpush1.xpose.msra.mxu0 %v131
  %210 = vmatprep.subr.mxu0 0.0
  %211 = vmatpush1.xpose.msra.mxu0 %v134
  %212 = vmatprep.subr.mxu0 0.0
  %213 = vmatpush1.xpose.msra.mxu0 %v137
  %214 = vmatprep.subr.mxu0 0.0
  %215 = vmatpush1.xpose.msra.mxu0 %v140
  %216 = vmatprep.subr.mxu0 0.0
  %217 = vmatpush1.xpose.msra.mxu0 %v143
  %218 = vmatprep.subr.mxu0 0.0
  %219 = vmatpush1.xpose.msra.mxu0 %v146
  %220 = vmatprep.subr.mxu0 0.0
  %221 = vmatpush1.xpose.msra.mxu0 %v149
  %222 = vmatprep.subr.mxu0 0.0
  %223 = vmatpush1.xpose.msra.mxu0 %v152
  %224 = vmatprep.subr.mxu0 0.0
  %225 = vmatpush1.xpose.msra.mxu0 %v155
  %226 = vmatprep.subr.mxu0 0.0
  %227 = vmatpush1.xpose.msra.mxu0 %v158
  %228 = vmatprep.subr.mxu0 0.0
  %229 = vmatpush1.xpose.msra.mxu0 %v161
  %230 = vmatprep.subr.mxu0 0.0
  %231 = vmatpush1.xpose.msra.mxu0 %v164
  %232 = vmatprep.subr.mxu0 0.0
  %233 = vmatpush1.xpose.msra.mxu0 %v167
  %234 = vmatprep.subr.mxu0 0.0
  %235 = vmatpush1.xpose.msra.mxu0 %v170
  %236 = vmatprep.mubr.f32.mxu0 0.0
  %237 = vmatmul.mubr.f32.gmra.mrb[0].mxu0 %v68
  %v238 = vpop.f32.mrb[0].mxu0
  %v239 = vadd.f32 %v50, %v238
  %v240 = vpop.f32.mrb[0].mxu0
  %v241 = vadd.f32 %v50, %v240
  %242 = vmatprep.mubr.f32.mxu0 0.0
  %243 = vmatmul.mubr.f32.gmra.mrb[0].mxu0 %v70
  %v244 = vpop.f32.mrb[0].mxu0
  %v245 = vadd.f32 %v55, %v244
  %v246 = vpop.f32.mrb[0].mxu0
  %v247 = vadd.f32 %v55, %v246
  %248 = vmatprep.mubr.f32.mxu0 0.0
  %249 = vmatmul.mubr.f32.gmra.mrb[0].mxu0 %v72
  %v250 = vpop.f32.mrb[0].mxu0
  %v251 = vadd.f32 %v60, %v250
  %v252 = vpop.f32.mrb[0].mxu0
  %v253 = vadd.f32 %v60, %v252
  %254 = vmatprep.mubr.f32.mxu0 0.0
  %255 = vmatmul.mubr.f32.gmra.mrb[0].mxu0 %v74
  %v256 = vpop.f32.mrb[0].mxu0
  %v257 = vadd.f32 %v65, %v256
  %v258 = vpop.f32.mrb[0].mxu0
  %v259 = vadd.f32 %v65, %v258
  %260 = vdwg.mxu0
  %v261 = vadd.f32 %v239, %v245
  %v262 = vadd.f32 %v261, %v251
  %vm263 = vcmask 1043456
  %v264 = vsel %vm263, %v257, 0.0
  %v265 = vadd.f32 %v262, %v264
  %v266 = vrot.slane %v265, 4
  %v267 = vadd.f32 %v265, %v266
  %v268 = vrot.slane %v267, 2
  %v269 = vadd.f32 %v267, %v268
  %v270 = vrot.slane %v269, 1
  %v271 = vadd.f32 %v269, %v270
  %v272 = vadd.f32 %v241, %v247
  %v273 = vadd.f32 %v272, %v253
  %v274 = vsel %vm263, %v259, 0.0
  %v275 = vadd.f32 %v273, %v274
  %v276 = vrot.slane %v275, 4
  %v277 = vadd.f32 %v275, %v276
  %v278 = vrot.slane %v277, 2
  %v279 = vadd.f32 %v277, %v278
  %v280 = vrot.slane %v279, 1
  %v281 = vadd.f32 %v279, %v280
  %v282 = vrcp.pop 28.0
  %v283 = vmul.f32 %v271, %v282
  %v284 = vmul.f32 %v281, %v282
  %v285 = vmul.f32 %v239, %v239
  %v286 = vmul.f32 %v241, %v241
  %v287 = vmul.f32 %v245, %v245
  %v288 = vmul.f32 %v247, %v247
  %v289 = vmul.f32 %v251, %v251
  %v290 = vmul.f32 %v253, %v253
  %v291 = vmul.f32 %v257, %v257
  %v292 = vmul.f32 %v259, %v259
  %v293 = vadd.f32 %v285, %v287
  %v294 = vadd.f32 %v293, %v289
  %v295 = vsel %vm263, %v291, 0.0
  %v296 = vadd.f32 %v294, %v295
  %v297 = vrot.slane %v296, 4
  %v298 = vadd.f32 %v296, %v297
  %v299 = vrot.slane %v298, 2
  %v300 = vadd.f32 %v298, %v299
  %v301 = vrot.slane %v300, 1
  %v302 = vadd.f32 %v300, %v301
  %v303 = vadd.f32 %v286, %v288
  %v304 = vadd.f32 %v303, %v290
  %v305 = vsel %vm263, %v292, 0.0
  %v306 = vadd.f32 %v304, %v305
  %v307 = vrot.slane %v306, 4
  %v308 = vadd.f32 %v306, %v307
  %v309 = vrot.slane %v308, 2
  %v310 = vadd.f32 %v308, %v309
  %v311 = vrot.slane %v310, 1
  %v312 = vadd.f32 %v310, %v311
  %v313 = vmul.f32 %v302, %v282
  %v314 = vmul.f32 %v312, %v282
  %v315 = vmul.f32 %v283, %v283
  %v316 = vmul.f32 %v284, %v284
  %v317 = vsub.f32 %v313, %v315
  %v318 = vsub.f32 %v314, %v316
  %v319 = vsub.f32 %v239, %v283
  %v320 = vsub.f32 %v241, %v284
  %v321 = vsub.f32 %v245, %v283
  %v322 = vsub.f32 %v247, %v284
  %v323 = vsub.f32 %v251, %v283
  %v324 = vsub.f32 %v253, %v284
  %v325 = vsub.f32 %v257, %v283
  %v326 = vsub.f32 %v259, %v284
  %v327 = vadd.f32 %v317, 1e-05
  %v328 = vadd.f32 %v318, 1e-05
  %v329 = vrsqrt.pop %v327
  %v330 = vrsqrt.pop %v328
  %v331 = vmul.f32 %v319, %v329
  %v332 = vmul.f32 %v320, %v330
  %v333 = vmul.f32 %v321, %v329
  %v334 = vmul.f32 %v322, %v330
  %v335 = vmul.f32 %v323, %v329
  %v336 = vmul.f32 %v324, %v330
  %v337 = vmul.f32 %v325, %v329
  %v338 = vmul.f32 %v326, %v330
  %339 = vset.pattern.permute.xlu0 9
  %340 = vperm.xlu0 %339, %v43
  %v341 = vpop.permute.xlu0 %340
  %343 = vset.pattern.permute.xlu0 9
  %344 = vperm.xlu0 %343, %v44
  %v345 = vpop.permute.xlu0 %344
  %347 = vset.pattern.permute.xlu0 9
  %348 = vperm.xlu0 %347, %v45
  %v349 = vpop.permute.xlu0 %348
  %351 = vset.pattern.permute.xlu0 9
  %352 = vperm.xlu0 %351, %v46
  %v353 = vpop.permute.xlu0 %352
  %v355 = vmul.f32 %v331, %v341
  %v356 = vmul.f32 %v332, %v341
  %v357 = vmul.f32 %v333, %v345
  %v358 = vmul.f32 %v334, %v345
  %v359 = vmul.f32 %v335, %v349
  %v360 = vmul.f32 %v336, %v349
  %v361 = vmul.f32 %v337, %v353
  %v362 = vmul.f32 %v338, %v353
  %363 = vset.pattern.permute.xlu0 10
  %364 = vperm.xlu0 %363, %v43
  %v365 = vpop.permute.xlu0 %364
  %367 = vset.pattern.permute.xlu0 10
  %368 = vperm.xlu0 %367, %v44
  %v369 = vpop.permute.xlu0 %368
  %371 = vset.pattern.permute.xlu0 10
  %372 = vperm.xlu0 %371, %v45
  %v373 = vpop.permute.xlu0 %372
  %375 = vset.pattern.permute.xlu0 10
  %376 = vperm.xlu0 %375, %v46
  %v377 = vpop.permute.xlu0 %376
  %v379 = vadd.f32 %v355, %v365
  %v380 = vadd.f32 %v356, %v365
  %v381 = vadd.f32 %v357, %v369
  %v382 = vadd.f32 %v358, %v369
  %v383 = vadd.f32 %v359, %v373
  %v384 = vadd.f32 %v360, %v373
  %v385 = vadd.f32 %v361, %v377
  %v386 = vadd.f32 %v362, %v377
  %v387 = vmul.f32 %v379, 0.5
  %v388 = vmul.f32 %v380, 0.5
  %v389 = vmul.f32 %v381, 0.5
  %v390 = vmul.f32 %v382, 0.5
  %v391 = vmul.f32 %v383, 0.5
  %v392 = vmul.f32 %v384, 0.5
  %v393 = vmul.f32 %v385, 0.5
  %v394 = vmul.f32 %v386, 0.5
  %v395 = vrcp.pop 1.4142135
  %v396 = vmul.f32 %v379, %v395
  %v397 = vmul.f32 %v380, %v395
  %v398 = vmul.f32 %v381, %v395
  %v399 = vmul.f32 %v382, %v395
  %v400 = vmul.f32 %v383, %v395
  %v401 = vmul.f32 %v384, %v395
  %v402 = vmul.f32 %v385, %v395
  %v403 = vmul.f32 %v386, %v395
  %v404 = verf.f32.pop %v396
  %v405 = verf.f32.pop %v397
  %v406 = verf.f32.pop %v398
  %v407 = verf.f32.pop %v399
  %v408 = verf.f32.pop %v400
  %v409 = verf.f32.pop %v401
  %v410 = verf.f32.pop %v402
  %v411 = verf.f32.pop %v403
  %v412 = vadd.f32 %v404, 1.0
  %v413 = vadd.f32 %v405, 1.0
  %v414 = vadd.f32 %v406, 1.0
  %v415 = vadd.f32 %v407, 1.0
  %v416 = vadd.f32 %v408, 1.0
  %v417 = vadd.f32 %v409, 1.0
  %v418 = vadd.f32 %v410, 1.0
  %v419 = vadd.f32 %v411, 1.0
  %v420 = vmul.f32 %v387, %v412
  %v421 = vmul.f32 %v388, %v413
  %v422 = vmul.f32 %v389, %v414
  %v423 = vmul.f32 %v390, %v415
  %v424 = vmul.f32 %v391, %v416
  %v425 = vmul.f32 %v392, %v417
  %v426 = vmul.f32 %v393, %v418
  %v427 = vmul.f32 %v394, %v419
  %v428 = vld [vmem:[%s1 + $0xa0] sm:$0xff]
  %430 = vset.pattern.permute.xlu0 28
  %431 = vperm.xlu0 %430, %v428
  %v432 = vpop.permute.xlu0 %431
  %vm434 = vcmask 228352
  %v435 = vsel %vm434, %v428, 0
  %v438 = vsel %vm263, %v426, 0
  %v441 = vsel %vm263, %v427, 0
  %443 = vmatprep.subr.mxu0 %v421
  %444 = vmatpush1.msra.mxu0 %v420
  %445 = vmatprep.subr.mxu0 %v423
  %446 = vmatpush1.msra.mxu0 %v422
  %447 = vmatprep.subr.mxu0 %v425
  %448 = vmatpush1.msra.mxu0 %v424
  %449 = vmatprep.subr.mxu0 %v441
  %450 = vmatpush1.msra.mxu0 %v438
  %451 = vmatprep.subr.mxu0 0.0
  %452 = vmatpush1.msra.mxu0 0.0
  %453 = vmatprep.subr.mxu0 0.0
  %454 = vmatpush1.msra.mxu0 0.0
  %455 = vmatprep.subr.mxu0 0.0
  %456 = vmatpush1.msra.mxu0 0.0
  %457 = vmatprep.subr.mxu0 0.0
  %458 = vmatpush1.msra.mxu0 0.0
  %459 = vmatprep.subr.mxu0 0.0
  %460 = vmatpush1.msra.mxu0 0.0
  %461 = vmatprep.subr.mxu0 0.0
  %462 = vmatpush1.msra.mxu0 0.0
  %463 = vmatprep.subr.mxu0 0.0
  %464 = vmatpush1.msra.mxu0 0.0
  %465 = vmatprep.subr.mxu0 0.0
  %466 = vmatpush1.msra.mxu0 0.0
  %467 = vmatprep.subr.mxu0 0.0
  %468 = vmatpush1.msra.mxu0 0.0
  %469 = vmatprep.subr.mxu0 0.0
  %470 = vmatpush1.msra.mxu0 0.0
  %471 = vmatprep.subr.mxu0 0.0
  %472 = vmatpush1.msra.mxu0 0.0
  %473 = vmatprep.subr.mxu0 0.0
  %474 = vmatpush1.msra.mxu0 0.0
  %475 = vmatprep.subr.mxu0 0.0
  %476 = vmatpush1.msra.mxu0 0.0
  %477 = vmatprep.subr.mxu0 0.0
  %478 = vmatpush1.msra.mxu0 0.0
  %479 = vmatprep.subr.mxu0 0.0
  %480 = vmatpush1.msra.mxu0 0.0
  %481 = vmatprep.subr.mxu0 0.0
  %482 = vmatpush1.msra.mxu0 0.0
  %483 = vmatprep.subr.mxu0 0.0
  %484 = vmatpush1.msra.mxu0 0.0
  %485 = vmatprep.subr.mxu0 0.0
  %486 = vmatpush1.msra.mxu0 0.0
  %487 = vmatprep.subr.mxu0 0.0
  %488 = vmatpush1.msra.mxu0 0.0
  %489 = vmatprep.subr.mxu0 0.0
  %490 = vmatpush1.msra.mxu0 0.0
  %491 = vmatprep.subr.mxu0 0.0
  %492 = vmatpush1.msra.mxu0 0.0
  %493 = vmatprep.subr.mxu0 0.0
  %494 = vmatpush1.msra.mxu0 0.0
  %495 = vmatprep.subr.mxu0 0.0
  %496 = vmatpush1.msra.mxu0 0.0
  %497 = vmatprep.subr.mxu0 0.0
  %498 = vmatpush1.msra.mxu0 0.0
  %499 = vmatprep.subr.mxu0 0.0
  %500 = vmatpush1.msra.mxu0 0.0
  %501 = vmatprep.subr.mxu0 0.0
  %502 = vmatpush1.msra.mxu0 0.0
  %503 = vmatprep.subr.mxu0 0.0
  %504 = vmatpush1.msra.mxu0 0.0
  %505 = vmatprep.subr.mxu0 0.0
  %506 = vmatpush1.msra.mxu0 0.0
  %507 = vmatprep.mubr.f32.mxu0 0.0
  %508 = vmatmul.mubr.f32.gmra.mrb[0].mxu0 %v435
  %v509 = vpop.f32.mrb[0].mxu0
  %v510 = vadd.f32 %v432, %v509
  %v511 = vpop.f32.mrb[0].mxu0
  %v512 = vadd.f32 %v432, %v511
  %513 = vdwg.mxu0
  %v514 = vrot.slane %v510, 4
  %v515 = vadd.f32 %v510, %v514
  %v516 = vrot.slane %v515, 2
  %v517 = vadd.f32 %v515, %v516
  %v518 = vrot.slane %v517, 1
  %v519 = vadd.f32 %v517, %v518
  %v520 = vrot.slane %v512, 4
  %v521 = vadd.f32 %v512, %v520
  %v522 = vrot.slane %v521, 2
  %v523 = vadd.f32 %v521, %v522
  %v524 = vrot.slane %v523, 1
  %v525 = vadd.f32 %v523, %v524
  %v526 = vrcp.pop 8.0
  %v527 = vmul.f32 %v519, %v526
  %v528 = vmul.f32 %v525, %v526
  %v529 = vmul.f32 %v510, %v510
  %v530 = vmul.f32 %v512, %v512
  %v531 = vrot.slane %v529, 4
  %v532 = vadd.f32 %v529, %v531
  %v533 = vrot.slane %v532, 2
  %v534 = vadd.f32 %v532, %v533
  %v535 = vrot.slane %v534, 1
  %v536 = vadd.f32 %v534, %v535
  %v537 = vrot.slane %v530, 4
  %v538 = vadd.f32 %v530, %v537
  %v539 = vrot.slane %v538, 2
  %v540 = vadd.f32 %v538, %v539
  %v541 = vrot.slane %v540, 1
  %v542 = vadd.f32 %v540, %v541
  %v543 = vmul.f32 %v536, %v526
  %v544 = vmul.f32 %v542, %v526
  %v545 = vmul.f32 %v527, %v527
  %v546 = vmul.f32 %v528, %v528
  %v547 = vsub.f32 %v543, %v545
  %v548 = vsub.f32 %v544, %v546
  %v549 = vsub.f32 %v510, %v527
  %v550 = vsub.f32 %v512, %v528
  %v551 = vadd.f32 %v547, 1e-05
  %v552 = vadd.f32 %v548, 1e-05
  %v553 = vrsqrt.pop %v551
  %v554 = vrsqrt.pop %v552
  %v555 = vmul.f32 %v549, %v553
  %v556 = vmul.f32 %v550, %v554
  %557 = vset.pattern.permute.xlu0 29
  %558 = vperm.xlu0 %557, %v428
  %v559 = vpop.permute.xlu0 %558
  %v561 = vmul.f32 %v555, %v559
  %v562 = vmul.f32 %v556, %v559
  %563 = vset.pattern.permute.xlu0 30
  %564 = vperm.xlu0 %563, %v428
  %v565 = vpop.permute.xlu0 %564
  %v567 = vadd.f32 %v561, %v565
  %v568 = vadd.f32 %v562, %v565
  %v569 = vmul.f32 %v567, 0.5
  %v570 = vmul.f32 %v568, 0.5
  %v571 = vmul.f32 %v567, %v395
  %v572 = vmul.f32 %v568, %v395
  %v573 = verf.f32.pop %v571
  %v574 = verf.f32.pop %v572
  %v575 = vadd.f32 %v573, 1.0
  %v576 = vadd.f32 %v574, 1.0
  %v577 = vmul.f32 %v569, %v575
  %v578 = vmul.f32 %v570, %v576
  %v579 = vld [vmem:[%s1 + $0x20] sm:$0xff]
  %v580 = vld [vmem:[%s1 + $0x28] sm:$0xff]
  %v581 = vld [vmem:[%s1 + $0x30] sm:$0xff]
  %v582 = vld [vmem:[%s1 + $0x38] sm:$0xff]
  %v583 = vld [vmem:[%s1 + $0x40] sm:$0xff]
  %v584 = vld [vmem:[%s1 + $0x48] sm:$0xff]
  %v585 = vld [vmem:[%s1 + $0x50] sm:$0xff]
  %587 = vset.pattern.permute.xlu0 28
  %588 = vperm.xlu0 %587, %v579
  %v589 = vpop.permute.xlu0 %588
  %592 = vset.pattern.permute.xlu0 28
  %593 = vperm.xlu0 %592, %v580
  %v594 = vpop.permute.xlu0 %593
  %597 = vset.pattern.permute.xlu0 28
  %598 = vperm.xlu0 %597, %v581
  %v599 = vpop.permute.xlu0 %598
  %602 = vset.pattern.permute.xlu0 28
  %603 = vperm.xlu0 %602, %v582
  %v604 = vpop.permute.xlu0 %603
  %607 = vset.pattern.permute.xlu0 28
  %608 = vperm.xlu0 %607, %v583
  %v609 = vpop.permute.xlu0 %608
  %612 = vset.pattern.permute.xlu0 28
  %613 = vperm.xlu0 %612, %v584
  %v614 = vpop.permute.xlu0 %613
  %617 = vset.pattern.permute.xlu0 28
  %618 = vperm.xlu0 %617, %v585
  %v619 = vpop.permute.xlu0 %618
  %v621 = vsel %vm434, %v579, 0
  %v623 = vsel %vm434, %v580, 0
  %v625 = vsel %vm434, %v581, 0
  %v627 = vsel %vm434, %v582, 0
  %v629 = vsel %vm434, %v583, 0
  %v631 = vsel %vm434, %v584, 0
  %v633 = vsel %vm434, %v585, 0
  %635 = vmatprep.subr.mxu0 %v421
  %636 = vmatpush1.msra.mxu0 %v420
  %637 = vmatprep.subr.mxu0 %v423
  %638 = vmatpush1.msra.mxu0 %v422
  %639 = vmatprep.subr.mxu0 %v425
  %640 = vmatpush1.msra.mxu0 %v424
  %641 = vmatprep.subr.mxu0 %v441
  %642 = vmatpush1.msra.mxu0 %v438
  %643 = vmatprep.subr.mxu0 0.0
  %644 = vmatpush1.msra.mxu0 0.0
  %645 = vmatprep.subr.mxu0 0.0
  %646 = vmatpush1.msra.mxu0 0.0
  %647 = vmatprep.subr.mxu0 0.0
  %648 = vmatpush1.msra.mxu0 0.0
  %649 = vmatprep.subr.mxu0 0.0
  %650 = vmatpush1.msra.mxu0 0.0
  %651 = vmatprep.subr.mxu0 0.0
  %652 = vmatpush1.msra.mxu0 0.0
  %653 = vmatprep.subr.mxu0 0.0
  %654 = vmatpush1.msra.mxu0 0.0
  %655 = vmatprep.subr.mxu0 0.0
  %656 = vmatpush1.msra.mxu0 0.0
  %657 = vmatprep.subr.mxu0 0.0
  %658 = vmatpush1.msra.mxu0 0.0
  %659 = vmatprep.subr.mxu0 0.0
  %660 = vmatpush1.msra.mxu0 0.0
  %661 = vmatprep.subr.mxu0 0.0
  %662 = vmatpush1.msra.mxu0 0.0
  %663 = vmatprep.subr.mxu0 0.0
  %664 = vmatpush1.msra.mxu0 0.0
  %665 = vmatprep.subr.mxu0 0.0
  %666 = vmatpush1.msra.mxu0 0.0
  %667 = vmatprep.subr.mxu0 0.0
  %668 = vmatpush1.msra.mxu0 0.0
  %669 = vmatprep.subr.mxu0 0.0
  %670 = vmatpush1.msra.mxu0 0.0
  %671 = vmatprep.subr.mxu0 0.0
  %672 = vmatpush1.msra.mxu0 0.0
  %673 = vmatprep.subr.mxu0 0.0
  %674 = vmatpush1.msra.mxu0 0.0
  %675 = vmatprep.subr.mxu0 0.0
  %676 = vmatpush1.msra.mxu0 0.0
  %677 = vmatprep.subr.mxu0 0.0
  %678 = vmatpush1.msra.mxu0 0.0
  %679 = vmatprep.subr.mxu0 0.0
  %680 = vmatpush1.msra.mxu0 0.0
  %681 = vmatprep.subr.mxu0 0.0
  %682 = vmatpush1.msra.mxu0 0.0
  %683 = vmatprep.subr.mxu0 0.0
  %684 = vmatpush1.msra.mxu0 0.0
  %685 = vmatprep.subr.mxu0 0.0
  %686 = vmatpush1.msra.mxu0 0.0
  %687 = vmatprep.subr.mxu0 0.0
  %688 = vmatpush1.msra.mxu0 0.0
  %689 = vmatprep.subr.mxu0 0.0
  %690 = vmatpush1.msra.mxu0 0.0
  %691 = vmatprep.subr.mxu0 0.0
  %692 = vmatpush1.msra.mxu0 0.0
  %693 = vmatprep.subr.mxu0 0.0
  %694 = vmatpush1.msra.mxu0 0.0
  %695 = vmatprep.subr.mxu0 0.0
  %696 = vmatpush1.msra.mxu0 0.0
  %697 = vmatprep.subr.mxu0 0.0
  %698 = vmatpush1.msra.mxu0 0.0
  %699 = vmatprep.mubr.f32.mxu0 0.0
  %700 = vmatmul.mubr.f32.gmra.mrb[0].mxu0 %v621
  %v701 = vpop.f32.mrb[0].mxu0
  %v702 = vadd.f32 %v589, %v701
  %v703 = vpop.f32.mrb[0].mxu0
  %v704 = vadd.f32 %v589, %v703
  %705 = vmatprep.mubr.f32.mxu0 0.0
  %706 = vmatmul.mubr.f32.gmra.mrb[0].mxu0 %v623
  %v707 = vpop.f32.mrb[0].mxu0
  %v708 = vadd.f32 %v594, %v707
  %v709 = vpop.f32.mrb[0].mxu0
  %v710 = vadd.f32 %v594, %v709
  %711 = vmatprep.mubr.f32.mxu0 0.0
  %712 = vmatmul.mubr.f32.gmra.mrb[0].mxu0 %v625
  %v713 = vpop.f32.mrb[0].mxu0
  %v714 = vadd.f32 %v599, %v713
  %v715 = vpop.f32.mrb[0].mxu0
  %v716 = vadd.f32 %v599, %v715
  %717 = vmatprep.mubr.f32.mxu0 0.0
  %718 = vmatmul.mubr.f32.gmra.mrb[0].mxu0 %v627
  %v719 = vpop.f32.mrb[0].mxu0
  %v720 = vadd.f32 %v604, %v719
  %v721 = vpop.f32.mrb[0].mxu0
  %v722 = vadd.f32 %v604, %v721
  %723 = vmatprep.mubr.f32.mxu0 0.0
  %724 = vmatmul.mubr.f32.gmra.mrb[0].mxu0 %v629
  %v725 = vpop.f32.mrb[0].mxu0
  %v726 = vadd.f32 %v609, %v725
  %v727 = vpop.f32.mrb[0].mxu0
  %v728 = vadd.f32 %v609, %v727
  %729 = vmatprep.mubr.f32.mxu0 0.0
  %730 = vmatmul.mubr.f32.gmra.mrb[0].mxu0 %v631
  %v731 = vpop.f32.mrb[0].mxu0
  %v732 = vadd.f32 %v614, %v731
  %v733 = vpop.f32.mrb[0].mxu0
  %v734 = vadd.f32 %v614, %v733
  %735 = vmatprep.mubr.f32.mxu0 0.0
  %736 = vmatmul.mubr.f32.gmra.mrb[0].mxu0 %v633
  %v737 = vpop.f32.mrb[0].mxu0
  %v738 = vadd.f32 %v619, %v737
  %v739 = vpop.f32.mrb[0].mxu0
  %v740 = vadd.f32 %v619, %v739
  %741 = vdwg.mxu0
  %v742 = vadd.f32 %v702, %v708
  %v743 = vadd.f32 %v742, %v714
  %v744 = vadd.f32 %v743, %v720
  %v745 = vadd.f32 %v744, %v726
  %v746 = vadd.f32 %v745, %v732
  %v747 = vadd.f32 %v746, %v738
  %v748 = vrot.slane %v747, 4
  %v749 = vadd.f32 %v747, %v748
  %v750 = vrot.slane %v749, 2
  %v751 = vadd.f32 %v749, %v750
  %v752 = vrot.slane %v751, 1
  %v753 = vadd.f32 %v751, %v752
  %v754 = vadd.f32 %v704, %v710
  %v755 = vadd.f32 %v754, %v716
  %v756 = vadd.f32 %v755, %v722
  %v757 = vadd.f32 %v756, %v728
  %v758 = vadd.f32 %v757, %v734
  %v759 = vadd.f32 %v758, %v740
  %v760 = vrot.slane %v759, 4
  %v761 = vadd.f32 %v759, %v760
  %v762 = vrot.slane %v761, 2
  %v763 = vadd.f32 %v761, %v762
  %v764 = vrot.slane %v763, 1
  %v765 = vadd.f32 %v763, %v764
  %v766 = vrcp.pop 56.0
  %v767 = vmul.f32 %v753, %v766
  %v768 = vmul.f32 %v765, %v766
  %v769 = vmul.f32 %v702, %v702
  %v770 = vmul.f32 %v704, %v704
  %v771 = vmul.f32 %v708, %v708
  %v772 = vmul.f32 %v710, %v710
  %v773 = vmul.f32 %v714, %v714
  %v774 = vmul.f32 %v716, %v716
  %v775 = vmul.f32 %v720, %v720
  %v776 = vmul.f32 %v722, %v722
  %v777 = vmul.f32 %v726, %v726
  %v778 = vmul.f32 %v728, %v728
  %v779 = vmul.f32 %v732, %v732
  %v780 = vmul.f32 %v734, %v734
  %v781 = vmul.f32 %v738, %v738
  %v782 = vmul.f32 %v740, %v740
  %v783 = vadd.f32 %v769, %v771
  %v784 = vadd.f32 %v783, %v773
  %v785 = vadd.f32 %v784, %v775
  %v786 = vadd.f32 %v785, %v777
  %v787 = vadd.f32 %v786, %v779
  %v788 = vadd.f32 %v787, %v781
  %v789 = vrot.slane %v788, 4
  %v790 = vadd.f32 %v788, %v789
  %v791 = vrot.slane %v790, 2
  %v792 = vadd.f32 %v790, %v791
  %v793 = vrot.slane %v792, 1
  %v794 = vadd.f32 %v792, %v793
  %v795 = vadd.f32 %v770, %v772
  %v796 = vadd.f32 %v795, %v774
  %v797 = vadd.f32 %v796, %v776
  %v798 = vadd.f32 %v797, %v778
  %v799 = vadd.f32 %v798, %v780
  %v800 = vadd.f32 %v799, %v782
  %v801 = vrot.slane %v800, 4
  %v802 = vadd.f32 %v800, %v801
  %v803 = vrot.slane %v802, 2
  %v804 = vadd.f32 %v802, %v803
  %v805 = vrot.slane %v804, 1
  %v806 = vadd.f32 %v804, %v805
  %v807 = vmul.f32 %v794, %v766
  %v808 = vmul.f32 %v806, %v766
  %v809 = vmul.f32 %v767, %v767
  %v810 = vmul.f32 %v768, %v768
  %v811 = vsub.f32 %v807, %v809
  %v812 = vsub.f32 %v808, %v810
  %v813 = vsub.f32 %v702, %v767
  %v814 = vsub.f32 %v704, %v768
  %v815 = vsub.f32 %v708, %v767
  %v816 = vsub.f32 %v710, %v768
  %v817 = vsub.f32 %v714, %v767
  %v818 = vsub.f32 %v716, %v768
  %v819 = vsub.f32 %v720, %v767
  %v820 = vsub.f32 %v722, %v768
  %v821 = vsub.f32 %v726, %v767
  %v822 = vsub.f32 %v728, %v768
  %v823 = vsub.f32 %v732, %v767
  %v824 = vsub.f32 %v734, %v768
  %v825 = vsub.f32 %v738, %v767
  %v826 = vsub.f32 %v740, %v768
  %v827 = vadd.f32 %v811, 1e-05
  %v828 = vadd.f32 %v812, 1e-05
  %v829 = vrsqrt.pop %v827
  %v830 = vrsqrt.pop %v828
  %v831 = vmul.f32 %v813, %v829
  %v832 = vmul.f32 %v814, %v830
  %v833 = vmul.f32 %v815, %v829
  %v834 = vmul.f32 %v816, %v830
  %v835 = vmul.f32 %v817, %v829
  %v836 = vmul.f32 %v818, %v830
  %v837 = vmul.f32 %v819, %v829
  %v838 = vmul.f32 %v820, %v830
  %v839 = vmul.f32 %v821, %v829
  %v840 = vmul.f32 %v822, %v830
  %v841 = vmul.f32 %v823, %v829
  %v842 = vmul.f32 %v824, %v830
  %v843 = vmul.f32 %v825, %v829
  %v844 = vmul.f32 %v826, %v830
  %845 = vset.pattern.permute.xlu0 29
  %846 = vperm.xlu0 %845, %v579
  %v847 = vpop.permute.xlu0 %846
  %849 = vset.pattern.permute.xlu0 29
  %850 = vperm.xlu0 %849, %v580
  %v851 = vpop.permute.xlu0 %850
  %853 = vset.pattern.permute.xlu0 29
  %854 = vperm.xlu0 %853, %v581
  %v855 = vpop.permute.xlu0 %854
  %857 = vset.pattern.permute.xlu0 29
  %858 = vperm.xlu0 %857, %v582
  %v859 = vpop.permute.xlu0 %858
  %861 = vset.pattern.permute.xlu0 29
  %862 = vperm.xlu0 %861, %v583
  %v863 = vpop.permute.xlu0 %862
  %865 = vset.pattern.permute.xlu0 29
  %866 = vperm.xlu0 %865, %v584
  %v867 = vpop.permute.xlu0 %866
  %869 = vset.pattern.permute.xlu0 29
  %870 = vperm.xlu0 %869, %v585
  %v871 = vpop.permute.xlu0 %870
  %v873 = vmul.f32 %v831, %v847
  %v874 = vmul.f32 %v832, %v847
  %v875 = vmul.f32 %v833, %v851
  %v876 = vmul.f32 %v834, %v851
  %v877 = vmul.f32 %v835, %v855
  %v878 = vmul.f32 %v836, %v855
  %v879 = vmul.f32 %v837, %v859
  %v880 = vmul.f32 %v838, %v859
  %v881 = vmul.f32 %v839, %v863
  %v882 = vmul.f32 %v840, %v863
  %v883 = vmul.f32 %v841, %v867
  %v884 = vmul.f32 %v842, %v867
  %v885 = vmul.f32 %v843, %v871
  %v886 = vmul.f32 %v844, %v871
  %887 = vset.pattern.permute.xlu0 30
  %888 = vperm.xlu0 %887, %v579
  %v889 = vpop.permute.xlu0 %888
  %891 = vset.pattern.permute.xlu0 30
  %892 = vperm.xlu0 %891, %v580
  %v893 = vpop.permute.xlu0 %892
  %895 = vset.pattern.permute.xlu0 30
  %896 = vperm.xlu0 %895, %v581
  %v897 = vpop.permute.xlu0 %896
  %899 = vset.pattern.permute.xlu0 30
  %900 = vperm.xlu0 %899, %v582
  %v901 = vpop.permute.xlu0 %900
  %903 = vset.pattern.permute.xlu0 30
  %904 = vperm.xlu0 %903, %v583
  %v905 = vpop.permute.xlu0 %904
  %907 = vset.pattern.permute.xlu0 30
  %908 = vperm.xlu0 %907, %v584
  %v909 = vpop.permute.xlu0 %908
  %911 = vset.pattern.permute.xlu0 30
  %912 = vperm.xlu0 %911, %v585
  %v913 = vpop.permute.xlu0 %912
  %v915 = vadd.f32 %v873, %v889
  %v916 = vadd.f32 %v874, %v889
  %v917 = vadd.f32 %v875, %v893
  %v918 = vadd.f32 %v876, %v893
  %v919 = vadd.f32 %v877, %v897
  %v920 = vadd.f32 %v878, %v897
  %v921 = vadd.f32 %v879, %v901
  %v922 = vadd.f32 %v880, %v901
  %v923 = vadd.f32 %v881, %v905
  %v924 = vadd.f32 %v882, %v905
  %v925 = vadd.f32 %v883, %v909
  %v926 = vadd.f32 %v884, %v909
  %v927 = vadd.f32 %v885, %v913
  %v928 = vadd.f32 %v886, %v913
  %v929 = vmul.f32 %v915, 0.5
  %v930 = vmul.f32 %v916, 0.5
  %v931 = vmul.f32 %v917, 0.5
  %v932 = vmul.f32 %v918, 0.5
  %v933 = vmul.f32 %v919, 0.5
  %v934 = vmul.f32 %v920, 0.5
  %v935 = vmul.f32 %v921, 0.5
  %v936 = vmul.f32 %v922, 0.5
  %v937 = vmul.f32 %v923, 0.5
  %v938 = vmul.f32 %v924, 0.5
  %v939 = vmul.f32 %v925, 0.5
  %v940 = vmul.f32 %v926, 0.5
  %v941 = vmul.f32 %v927, 0.5
  %v942 = vmul.f32 %v928, 0.5
  %v943 = vmul.f32 %v915, %v395
  %v944 = vmul.f32 %v916, %v395
  %v945 = vmul.f32 %v917, %v395
  %v946 = vmul.f32 %v918, %v395
  %v947 = vmul.f32 %v919, %v395
  %v948 = vmul.f32 %v920, %v395
  %v949 = vmul.f32 %v921, %v395
  %v950 = vmul.f32 %v922, %v395
  %v951 = vmul.f32 %v923, %v395
  %v952 = vmul.f32 %v924, %v395
  %v953 = vmul.f32 %v925, %v395
  %v954 = vmul.f32 %v926, %v395
  %v955 = vmul.f32 %v927, %v395
  %v956 = vmul.f32 %v928, %v395
  %v957 = verf.f32.pop %v943
  %v958 = verf.f32.pop %v944
  %v959 = verf.f32.pop %v945
  %v960 = verf.f32.pop %v946
  %v961 = verf.f32.pop %v947
  %v962 = verf.f32.pop %v948
  %v963 = verf.f32.pop %v949
  %v964 = verf.f32.pop %v950
  %v965 = verf.f32.pop %v951
  %v966 = verf.f32.pop %v952
  %v967 = verf.f32.pop %v953
  %v968 = verf.f32.pop %v954
  %v969 = verf.f32.pop %v955
  %v970 = verf.f32.pop %v956
  %v971 = vadd.f32 %v957, 1.0
  %v972 = vadd.f32 %v958, 1.0
  %v973 = vadd.f32 %v959, 1.0
  %v974 = vadd.f32 %v960, 1.0
  %v975 = vadd.f32 %v961, 1.0
  %v976 = vadd.f32 %v962, 1.0
  %v977 = vadd.f32 %v963, 1.0
  %v978 = vadd.f32 %v964, 1.0
  %v979 = vadd.f32 %v965, 1.0
  %v980 = vadd.f32 %v966, 1.0
  %v981 = vadd.f32 %v967, 1.0
  %v982 = vadd.f32 %v968, 1.0
  %v983 = vadd.f32 %v969, 1.0
  %v984 = vadd.f32 %v970, 1.0
  %v985 = vmul.f32 %v929, %v971
  %v986 = vmul.f32 %v930, %v972
  %v987 = vmul.f32 %v931, %v973
  %v988 = vmul.f32 %v932, %v974
  %v989 = vmul.f32 %v933, %v975
  %v990 = vmul.f32 %v934, %v976
  %v991 = vmul.f32 %v935, %v977
  %v992 = vmul.f32 %v936, %v978
  %v993 = vmul.f32 %v937, %v979
  %v994 = vmul.f32 %v938, %v980
  %v995 = vmul.f32 %v939, %v981
  %v996 = vmul.f32 %v940, %v982
  %v997 = vmul.f32 %v941, %v983
  %v998 = vmul.f32 %v942, %v984
  %v999 = vld [vmem:[%s1 + $0xa8] sm:$0xff]
  %1001 = vset.pattern.permute.xlu0 56
  %1002 = vperm.xlu0 %1001, %v999
  %v1003 = vpop.permute.xlu0 %1002
  %vm1005 = vcmask 457728
  %v1006 = vsel %vm1005, %v999, 0
  %1008 = vmatprep.subr.mxu0 %v986
  %1009 = vmatpush1.msra.mxu0 %v985
  %1010 = vmatprep.subr.mxu0 %v988
  %1011 = vmatpush1.msra.mxu0 %v987
  %1012 = vmatprep.subr.mxu0 %v990
  %1013 = vmatpush1.msra.mxu0 %v989
  %1014 = vmatprep.subr.mxu0 %v992
  %1015 = vmatpush1.msra.mxu0 %v991
  %1016 = vmatprep.subr.mxu0 %v994
  %1017 = vmatpush1.msra.mxu0 %v993
  %1018 = vmatprep.subr.mxu0 %v996
  %1019 = vmatpush1.msra.mxu0 %v995
  %1020 = vmatprep.subr.mxu0 %v998
  %1021 = vmatpush1.msra.mxu0 %v997
  %1022 = vmatprep.subr.mxu0 0.0
  %1023 = vmatpush1.msra.mxu0 0.0
  %1024 = vmatprep.subr.mxu0 0.0
  %1025 = vmatpush1.msra.mxu0 0.0
  %1026 = vmatprep.subr.mxu0 0.0
  %1027 = vmatpush1.msra.mxu0 0.0
  %1028 = vmatprep.subr.mxu0 0.0
  %1029 = vmatpush1.msra.mxu0 0.0
  %1030 = vmatprep.subr.mxu0 0.0
  %1031 = vmatpush1.msra.mxu0 0.0
  %1032 = vmatprep.subr.mxu0 0.0
  %1033 = vmatpush1.msra.mxu0 0.0
  %1034 = vmatprep.subr.mxu0 0.0
  %1035 = vmatpush1.msra.mxu0 0.0
  %1036 = vmatprep.subr.mxu0 0.0
  %1037 = vmatpush1.msra.mxu0 0.0
  %1038 = vmatprep.subr.mxu0 0.0
  %1039 = vmatpush1.msra.mxu0 0.0
  %1040 = vmatprep.subr.mxu0 0.0
  %1041 = vmatpush1.msra.mxu0 0.0
  %1042 = vmatprep.subr.mxu0 0.0
  %1043 = vmatpush1.msra.mxu0 0.0
  %1044 = vmatprep.subr.mxu0 0.0
  %1045 = vmatpush1.msra.mxu0 0.0
  %1046 = vmatprep.subr.mxu0 0.0
  %1047 = vmatpush1.msra.mxu0 0.0
  %1048 = vmatprep.subr.mxu0 0.0
  %1049 = vmatpush1.msra.mxu0 0.0
  %1050 = vmatprep.subr.mxu0 0.0
  %1051 = vmatpush1.msra.mxu0 0.0
  %1052 = vmatprep.subr.mxu0 0.0
  %1053 = vmatpush1.msra.mxu0 0.0
  %1054 = vmatprep.subr.mxu0 0.0
  %1055 = vmatpush1.msra.mxu0 0.0
  %1056 = vmatprep.subr.mxu0 0.0
  %1057 = vmatpush1.msra.mxu0 0.0
  %1058 = vmatprep.subr.mxu0 0.0
  %1059 = vmatpush1.msra.mxu0 0.0
  %1060 = vmatprep.subr.mxu0 0.0
  %1061 = vmatpush1.msra.mxu0 0.0
  %1062 = vmatprep.subr.mxu0 0.0
  %1063 = vmatpush1.msra.mxu0 0.0
  %1064 = vmatprep.subr.mxu0 0.0
  %1065 = vmatpush1.msra.mxu0 0.0
  %1066 = vmatprep.subr.mxu0 0.0
  %1067 = vmatpush1.msra.mxu0 0.0
  %1068 = vmatprep.subr.mxu0 0.0
  %1069 = vmatpush1.msra.mxu0 0.0
  %1070 = vmatprep.subr.mxu0 0.0
  %1071 = vmatpush1.msra.mxu0 0.0
  %1072 = vmatprep.mubr.f32.mxu0 0.0
  %1073 = vmatmul.mubr.f32.gmra.mrb[0].mxu0 %v1006
  %v1074 = vpop.f32.mrb[0].mxu0
  %v1075 = vadd.f32 %v1003, %v1074
  %v1076 = vpop.f32.mrb[0].mxu0
  %v1077 = vadd.f32 %v1003, %v1076
  %1078 = vdwg.mxu0
  %v1079 = vrot.slane %v1075, 4
  %v1080 = vadd.f32 %v1075, %v1079
  %v1081 = vrot.slane %v1080, 2
  %v1082 = vadd.f32 %v1080, %v1081
  %v1083 = vrot.slane %v1082, 1
  %v1084 = vadd.f32 %v1082, %v1083
  %v1085 = vrot.slane %v1077, 4
  %v1086 = vadd.f32 %v1077, %v1085
  %v1087 = vrot.slane %v1086, 2
  %v1088 = vadd.f32 %v1086, %v1087
  %v1089 = vrot.slane %v1088, 1
  %v1090 = vadd.f32 %v1088, %v1089
  %v1091 = vmul.f32 %v1084, %v526
  %v1092 = vmul.f32 %v1090, %v526
  %v1093 = vmul.f32 %v1075, %v1075
  %v1094 = vmul.f32 %v1077, %v1077
  %v1095 = vrot.slane %v1093, 4
  %v1096 = vadd.f32 %v1093, %v1095
  %v1097 = vrot.slane %v1096, 2
  %v1098 = vadd.f32 %v1096, %v1097
  %v1099 = vrot.slane %v1098, 1
  %v1100 = vadd.f32 %v1098, %v1099
  %v1101 = vrot.slane %v1094, 4
  %v1102 = vadd.f32 %v1094, %v1101
  %v1103 = vrot.slane %v1102, 2
  %v1104 = vadd.f32 %v1102, %v1103
  %v1105 = vrot.slane %v1104, 1
  %v1106 = vadd.f32 %v1104, %v1105
  %v1107 = vmul.f32 %v1100, %v526
  %v1108 = vmul.f32 %v1106, %v526
  %v1109 = vmul.f32 %v1091, %v1091
  %v1110 = vmul.f32 %v1092, %v1092
  %v1111 = vsub.f32 %v1107, %v1109
  %v1112 = vsub.f32 %v1108, %v1110
  %v1113 = vsub.f32 %v1075, %v1091
  %v1114 = vsub.f32 %v1077, %v1092
  %v1115 = vadd.f32 %v1111, 1e-05
  %v1116 = vadd.f32 %v1112, 1e-05
  %v1117 = vrsqrt.pop %v1115
  %v1118 = vrsqrt.pop %v1116
  %v1119 = vmul.f32 %v1113, %v1117
  %v1120 = vmul.f32 %v1114, %v1118
  %1121 = vset.pattern.permute.xlu0 57
  %1122 = vperm.xlu0 %1121, %v999
  %v1123 = vpop.permute.xlu0 %1122
  %v1125 = vmul.f32 %v1119, %v1123
  %v1126 = vmul.f32 %v1120, %v1123
  %1127 = vset.pattern.permute.xlu0 58
  %1128 = vperm.xlu0 %1127, %v999
  %v1129 = vpop.permute.xlu0 %1128
  %v1131 = vadd.f32 %v1125, %v1129
  %v1132 = vadd.f32 %v1126, %v1129
  %v1133 = vmul.f32 %v1131, 0.5
  %v1134 = vmul.f32 %v1132, 0.5
  %v1135 = vmul.f32 %v1131, %v395
  %v1136 = vmul.f32 %v1132, %v395
  %v1137 = verf.f32.pop %v1135
  %v1138 = verf.f32.pop %v1136
  %v1139 = vadd.f32 %v1137, 1.0
  %v1140 = vadd.f32 %v1138, 1.0
  %v1141 = vmul.f32 %v1133, %v1139
  %v1142 = vmul.f32 %v1134, %v1140
  %v1143 = vadd.f32 %v577, %v1141
  %v1144 = vadd.f32 %v578, %v1142
  %v1145 = vld [vmem:[%s1 + $0x58] sm:$0xff]
  %v1146 = vld [vmem:[%s1 + $0x60] sm:$0xff]
  %v1147 = vld [vmem:[%s1 + $0x68] sm:$0xff]
  %v1148 = vld [vmem:[%s1 + $0x70] sm:$0xff]
  %v1149 = vld [vmem:[%s1 + $0x78] sm:$0xff]
  %v1150 = vld [vmem:[%s1 + $0x80] sm:$0xff]
  %v1151 = vld [vmem:[%s1 + $0x88] sm:$0xff]
  %v1152 = vld [vmem:[%s1 + $0x90] sm:$0xff]
  %v1153 = vld [vmem:[%s1 + $0x98] sm:$0x3f]
  %1155 = vset.pattern.permute.xlu0 56
  %1156 = vperm.xlu0 %1155, %v1145
  %v1157 = vpop.permute.xlu0 %1156
  %1160 = vset.pattern.permute.xlu0 56
  %1161 = vperm.xlu0 %1160, %v1146
  %v1162 = vpop.permute.xlu0 %1161
  %1165 = vset.pattern.permute.xlu0 56
  %1166 = vperm.xlu0 %1165, %v1147
  %v1167 = vpop.permute.xlu0 %1166
  %1170 = vset.pattern.permute.xlu0 56
  %1171 = vperm.xlu0 %1170, %v1148
  %v1172 = vpop.permute.xlu0 %1171
  %1175 = vset.pattern.permute.xlu0 56
  %1176 = vperm.xlu0 %1175, %v1149
  %v1177 = vpop.permute.xlu0 %1176
  %1180 = vset.pattern.permute.xlu0 56
  %1181 = vperm.xlu0 %1180, %v1150
  %v1182 = vpop.permute.xlu0 %1181
  %1185 = vset.pattern.permute.xlu0 56
  %1186 = vperm.xlu0 %1185, %v1151
  %v1187 = vpop.permute.xlu0 %1186
  %1190 = vset.pattern.permute.xlu0 56
  %1191 = vperm.xlu0 %1190, %v1152
  %v1192 = vpop.permute.xlu0 %1191
  %1195 = vset.pattern.permute.xlu0 56
  %1196 = vperm.xlu0 %1195, %v1153
  %v1197 = vpop.permute.xlu0 %1196
  %v1199 = vsel %vm1005, %v1145, 0
  %v1201 = vsel %vm1005, %v1146, 0
  %v1203 = vsel %vm1005, %v1147, 0
  %v1205 = vsel %vm1005, %v1148, 0
  %v1207 = vsel %vm1005, %v1149, 0
  %v1209 = vsel %vm1005, %v1150, 0
  %v1211 = vsel %vm1005, %v1151, 0
  %v1213 = vsel %vm1005, %v1152, 0
  %v1215 = vsel %vm1005, %v1153, 0
  %1217 = vmatprep.subr.mxu0 %v986
  %1218 = vmatpush1.msra.mxu0 %v985
  %1219 = vmatprep.subr.mxu0 %v988
  %1220 = vmatpush1.msra.mxu0 %v987
  %1221 = vmatprep.subr.mxu0 %v990
  %1222 = vmatpush1.msra.mxu0 %v989
  %1223 = vmatprep.subr.mxu0 %v992
  %1224 = vmatpush1.msra.mxu0 %v991
  %1225 = vmatprep.subr.mxu0 %v994
  %1226 = vmatpush1.msra.mxu0 %v993
  %1227 = vmatprep.subr.mxu0 %v996
  %1228 = vmatpush1.msra.mxu0 %v995
  %1229 = vmatprep.subr.mxu0 %v998
  %1230 = vmatpush1.msra.mxu0 %v997
  %1231 = vmatprep.subr.mxu0 0.0
  %1232 = vmatpush1.msra.mxu0 0.0
  %1233 = vmatprep.subr.mxu0 0.0
  %1234 = vmatpush1.msra.mxu0 0.0
  %1235 = vmatprep.subr.mxu0 0.0
  %1236 = vmatpush1.msra.mxu0 0.0
  %1237 = vmatprep.subr.mxu0 0.0
  %1238 = vmatpush1.msra.mxu0 0.0
  %1239 = vmatprep.subr.mxu0 0.0
  %1240 = vmatpush1.msra.mxu0 0.0
  %1241 = vmatprep.subr.mxu0 0.0
  %1242 = vmatpush1.msra.mxu0 0.0
  %1243 = vmatprep.subr.mxu0 0.0
  %1244 = vmatpush1.msra.mxu0 0.0
  %1245 = vmatprep.subr.mxu0 0.0
  %1246 = vmatpush1.msra.mxu0 0.0
  %1247 = vmatprep.subr.mxu0 0.0
  %1248 = vmatpush1.msra.mxu0 0.0
  %1249 = vmatprep.subr.mxu0 0.0
  %1250 = vmatpush1.msra.mxu0 0.0
  %1251 = vmatprep.subr.mxu0 0.0
  %1252 = vmatpush1.msra.mxu0 0.0
  %1253 = vmatprep.subr.mxu0 0.0
  %1254 = vmatpush1.msra.mxu0 0.0
  %1255 = vmatprep.subr.mxu0 0.0
  %1256 = vmatpush1.msra.mxu0 0.0
  %1257 = vmatprep.subr.mxu0 0.0
  %1258 = vmatpush1.msra.mxu0 0.0
  %1259 = vmatprep.subr.mxu0 0.0
  %1260 = vmatpush1.msra.mxu0 0.0
  %1261 = vmatprep.subr.mxu0 0.0
  %1262 = vmatpush1.msra.mxu0 0.0
  %1263 = vmatprep.subr.mxu0 0.0
  %1264 = vmatpush1.msra.mxu0 0.0
  %1265 = vmatprep.subr.mxu0 0.0
  %1266 = vmatpush1.msra.mxu0 0.0
  %1267 = vmatprep.subr.mxu0 0.0
  %1268 = vmatpush1.msra.mxu0 0.0
  %1269 = vmatprep.subr.mxu0 0.0
  %1270 = vmatpush1.msra.mxu0 0.0
  %1271 = vmatprep.subr.mxu0 0.0
  %1272 = vmatpush1.msra.mxu0 0.0
  %1273 = vmatprep.subr.mxu0 0.0
  %1274 = vmatpush1.msra.mxu0 0.0
  %1275 = vmatprep.subr.mxu0 0.0
  %1276 = vmatpush1.msra.mxu0 0.0
  %1277 = vmatprep.subr.mxu0 0.0
  %1278 = vmatpush1.msra.mxu0 0.0
  %1279 = vmatprep.subr.mxu0 0.0
  %1280 = vmatpush1.msra.mxu0 0.0
  %1281 = vmatprep.mubr.f32.mxu0 0.0
  %1282 = vmatmul.mubr.f32.gmra.mrb[0].mxu0 %v1199
  %v1283 = vpop.f32.mrb[0].mxu0
  %v1284 = vadd.f32 %v1157, %v1283
  %v1285 = vpop.f32.mrb[0].mxu0
  %v1286 = vadd.f32 %v1157, %v1285
  %1287 = vmatprep.mubr.f32.mxu0 0.0
  %1288 = vmatmul.mubr.f32.gmra.mrb[0].mxu0 %v1201
  %v1289 = vpop.f32.mrb[0].mxu0
  %v1290 = vadd.f32 %v1162, %v1289
  %v1291 = vpop.f32.mrb[0].mxu0
  %v1292 = vadd.f32 %v1162, %v1291
  %1293 = vmatprep.mubr.f32.mxu0 0.0
  %1294 = vmatmul.mubr.f32.gmra.mrb[0].mxu0 %v1203
  %v1295 = vpop.f32.mrb[0].mxu0
  %v1296 = vadd.f32 %v1167, %v1295
  %v1297 = vpop.f32.mrb[0].mxu0
  %v1298 = vadd.f32 %v1167, %v1297
  %1299 = vmatprep.mubr.f32.mxu0 0.0
  %1300 = vmatmul.mubr.f32.gmra.mrb[0].mxu0 %v1205
  %v1301 = vpop.f32.mrb[0].mxu0
  %v1302 = vadd.f32 %v1172, %v1301
  %v1303 = vpop.f32.mrb[0].mxu0
  %v1304 = vadd.f32 %v1172, %v1303
  %1305 = vmatprep.mubr.f32.mxu0 0.0
  %1306 = vmatmul.mubr.f32.gmra.mrb[0].mxu0 %v1207
  %v1307 = vpop.f32.mrb[0].mxu0
  %v1308 = vadd.f32 %v1177, %v1307
  %v1309 = vpop.f32.mrb[0].mxu0
  %v1310 = vadd.f32 %v1177, %v1309
  %1311 = vmatprep.mubr.f32.mxu0 0.0
  %1312 = vmatmul.mubr.f32.gmra.mrb[0].mxu0 %v1209
  %v1313 = vpop.f32.mrb[0].mxu0
  %v1314 = vadd.f32 %v1182, %v1313
  %v1315 = vpop.f32.mrb[0].mxu0
  %v1316 = vadd.f32 %v1182, %v1315
  %1317 = vmatprep.mubr.f32.mxu0 0.0
  %1318 = vmatmul.mubr.f32.gmra.mrb[0].mxu0 %v1211
  %v1319 = vpop.f32.mrb[0].mxu0
  %v1320 = vadd.f32 %v1187, %v1319
  %v1321 = vpop.f32.mrb[0].mxu0
  %v1322 = vadd.f32 %v1187, %v1321
  %1323 = vmatprep.mubr.f32.mxu0 0.0
  %1324 = vmatmul.mubr.f32.gmra.mrb[0].mxu0 %v1213
  %v1325 = vpop.f32.mrb[0].mxu0
  %v1326 = vadd.f32 %v1192, %v1325
  %v1327 = vpop.f32.mrb[0].mxu0
  %v1328 = vadd.f32 %v1192, %v1327
  %1329 = vmatprep.mubr.f32.mxu0 0.0
  %1330 = vmatmul.mubr.f32.gmra.mrb[0].mxu0 %v1215
  %v1331 = vpop.f32.mrb[0].mxu0
  %v1332 = vadd.f32 %v1197, %v1331
  %v1333 = vpop.f32.mrb[0].mxu0
  %v1334 = vadd.f32 %v1197, %v1333
  %1335 = vdwg.mxu0
  %v1336 = vadd.f32 %v1284, %v1290
  %v1337 = vadd.f32 %v1336, %v1296
  %v1338 = vadd.f32 %v1337, %v1302
  %v1339 = vadd.f32 %v1338, %v1308
  %v1340 = vadd.f32 %v1339, %v1314
  %v1341 = vadd.f32 %v1340, %v1320
  %v1342 = vadd.f32 %v1341, %v1326
  %vm1343 = vcmask 1045504
  %v1344 = vsel %vm1343, %v1332, 0.0
  %v1345 = vadd.f32 %v1342, %v1344
  %v1346 = vrot.slane %v1345, 4
  %v1347 = vadd.f32 %v1345, %v1346
  %v1348 = vrot.slane %v1347, 2
  %v1349 = vadd.f32 %v1347, %v1348
  %v1350 = vrot.slane %v1349, 1
  %v1351 = vadd.f32 %v1349, %v1350
  %v1352 = vadd.f32 %v1286, %v1292
  %v1353 = vadd.f32 %v1352, %v1298
  %v1354 = vadd.f32 %v1353, %v1304
  %v1355 = vadd.f32 %v1354, %v1310
  %v1356 = vadd.f32 %v1355, %v1316
  %v1357 = vadd.f32 %v1356, %v1322
  %v1358 = vadd.f32 %v1357, %v1328
  %v1359 = vsel %vm1343, %v1334, 0.0
  %v1360 = vadd.f32 %v1358, %v1359
  %v1361 = vrot.slane %v1360, 4
  %v1362 = vadd.f32 %v1360, %v1361
  %v1363 = vrot.slane %v1362, 2
  %v1364 = vadd.f32 %v1362, %v1363
  %v1365 = vrot.slane %v1364, 1
  %v1366 = vadd.f32 %v1364, %v1365
  %v1367 = vrcp.pop 70.0
  %v1368 = vmul.f32 %v1351, %v1367
  %v1369 = vmul.f32 %v1366, %v1367
  %v1370 = vmul.f32 %v1284, %v1284
  %v1371 = vmul.f32 %v1286, %v1286
  %v1372 = vmul.f32 %v1290, %v1290
  %v1373 = vmul.f32 %v1292, %v1292
  %v1374 = vmul.f32 %v1296, %v1296
  %v1375 = vmul.f32 %v1298, %v1298
  %v1376 = vmul.f32 %v1302, %v1302
  %v1377 = vmul.f32 %v1304, %v1304
  %v1378 = vmul.f32 %v1308, %v1308
  %v1379 = vmul.f32 %v1310, %v1310
  %v1380 = vmul.f32 %v1314, %v1314
  %v1381 = vmul.f32 %v1316, %v1316
  %v1382 = vmul.f32 %v1320, %v1320
  %v1383 = vmul.f32 %v1322, %v1322
  %v1384 = vmul.f32 %v1326, %v1326
  %v1385 = vmul.f32 %v1328, %v1328
  %v1386 = vmul.f32 %v1332, %v1332
  %v1387 = vmul.f32 %v1334, %v1334
  %v1388 = vadd.f32 %v1370, %v1372
  %v1389 = vadd.f32 %v1388, %v1374
  %v1390 = vadd.f32 %v1389, %v1376
  %v1391 = vadd.f32 %v1390, %v1378
  %v1392 = vadd.f32 %v1391, %v1380
  %v1393 = vadd.f32 %v1392, %v1382
  %v1394 = vadd.f32 %v1393, %v1384
  %v1395 = vsel %vm1343, %v1386, 0.0
  %v1396 = vadd.f32 %v1394, %v1395
  %v1397 = vrot.slane %v1396, 4
  %v1398 = vadd.f32 %v1396, %v1397
  %v1399 = vrot.slane %v1398, 2
  %v1400 = vadd.f32 %v1398, %v1399
  %v1401 = vrot.slane %v1400, 1
  %v1402 = vadd.f32 %v1400, %v1401
  %v1403 = vadd.f32 %v1371, %v1373
  %v1404 = vadd.f32 %v1403, %v1375
  %v1405 = vadd.f32 %v1404, %v1377
  %v1406 = vadd.f32 %v1405, %v1379
  %v1407 = vadd.f32 %v1406, %v1381
  %v1408 = vadd.f32 %v1407, %v1383
  %v1409 = vadd.f32 %v1408, %v1385
  %v1410 = vsel %vm1343, %v1387, 0.0
  %v1411 = vadd.f32 %v1409, %v1410
  %v1412 = vrot.slane %v1411, 4
  %v1413 = vadd.f32 %v1411, %v1412
  %v1414 = vrot.slane %v1413, 2
  %v1415 = vadd.f32 %v1413, %v1414
  %v1416 = vrot.slane %v1415, 1
  %v1417 = vadd.f32 %v1415, %v1416
  %v1418 = vmul.f32 %v1402, %v1367
  %v1419 = vmul.f32 %v1417, %v1367
  %v1420 = vmul.f32 %v1368, %v1368
  %v1421 = vmul.f32 %v1369, %v1369
  %v1422 = vsub.f32 %v1418, %v1420
  %v1423 = vsub.f32 %v1419, %v1421
  %v1424 = vsub.f32 %v1284, %v1368
  %v1425 = vsub.f32 %v1286, %v1369
  %v1426 = vsub.f32 %v1290, %v1368
  %v1427 = vsub.f32 %v1292, %v1369
  %v1428 = vsub.f32 %v1296, %v1368
  %v1429 = vsub.f32 %v1298, %v1369
  %v1430 = vsub.f32 %v1302, %v1368
  %v1431 = vsub.f32 %v1304, %v1369
  %v1432 = vsub.f32 %v1308, %v1368
  %v1433 = vsub.f32 %v1310, %v1369
  %v1434 = vsub.f32 %v1314, %v1368
  %v1435 = vsub.f32 %v1316, %v1369
  %v1436 = vsub.f32 %v1320, %v1368
  %v1437 = vsub.f32 %v1322, %v1369
  %v1438 = vsub.f32 %v1326, %v1368
  %v1439 = vsub.f32 %v1328, %v1369
  %v1440 = vsub.f32 %v1332, %v1368
  %v1441 = vsub.f32 %v1334, %v1369
  %v1442 = vadd.f32 %v1422, 1e-05
  %v1443 = vadd.f32 %v1423, 1e-05
  %v1444 = vrsqrt.pop %v1442
  %v1445 = vrsqrt.pop %v1443
  %v1446 = vmul.f32 %v1424, %v1444
  %v1447 = vmul.f32 %v1425, %v1445
  %v1448 = vmul.f32 %v1426, %v1444
  %v1449 = vmul.f32 %v1427, %v1445
  %v1450 = vmul.f32 %v1428, %v1444
  %v1451 = vmul.f32 %v1429, %v1445
  %v1452 = vmul.f32 %v1430, %v1444
  %v1453 = vmul.f32 %v1431, %v1445
  %v1454 = vmul.f32 %v1432, %v1444
  %v1455 = vmul.f32 %v1433, %v1445
  %v1456 = vmul.f32 %v1434, %v1444
  %v1457 = vmul.f32 %v1435, %v1445
  %v1458 = vmul.f32 %v1436, %v1444
  %v1459 = vmul.f32 %v1437, %v1445
  %v1460 = vmul.f32 %v1438, %v1444
  %v1461 = vmul.f32 %v1439, %v1445
  %v1462 = vmul.f32 %v1440, %v1444
  %v1463 = vmul.f32 %v1441, %v1445
  %1464 = vset.pattern.permute.xlu0 57
  %1465 = vperm.xlu0 %1464, %v1145
  %v1466 = vpop.permute.xlu0 %1465
  %1468 = vset.pattern.permute.xlu0 57
  %1469 = vperm.xlu0 %1468, %v1146
  %v1470 = vpop.permute.xlu0 %1469
  %1472 = vset.pattern.permute.xlu0 57
  %1473 = vperm.xlu0 %1472, %v1147
  %v1474 = vpop.permute.xlu0 %1473
  %1476 = vset.pattern.permute.xlu0 57
  %1477 = vperm.xlu0 %1476, %v1148
  %v1478 = vpop.permute.xlu0 %1477
  %1480 = vset.pattern.permute.xlu0 57
  %1481 = vperm.xlu0 %1480, %v1149
  %v1482 = vpop.permute.xlu0 %1481
  %1484 = vset.pattern.permute.xlu0 57
  %1485 = vperm.xlu0 %1484, %v1150
  %v1486 = vpop.permute.xlu0 %1485
  %1488 = vset.pattern.permute.xlu0 57
  %1489 = vperm.xlu0 %1488, %v1151
  %v1490 = vpop.permute.xlu0 %1489
  %1492 = vset.pattern.permute.xlu0 57
  %1493 = vperm.xlu0 %1492, %v1152
  %v1494 = vpop.permute.xlu0 %1493
  %1496 = vset.pattern.permute.xlu0 57
  %1497 = vperm.xlu0 %1496, %v1153
  %v1498 = vpop.permute.xlu0 %1497
  %v1500 = vmul.f32 %v1446, %v1466
  %v1501 = vmul.f32 %v1447, %v1466
  %v1502 = vmul.f32 %v1448, %v1470
  %v1503 = vmul.f32 %v1449, %v1470
  %v1504 = vmul.f32 %v1450, %v1474
  %v1505 = vmul.f32 %v1451, %v1474
  %v1506 = vmul.f32 %v1452, %v1478
  %v1507 = vmul.f32 %v1453, %v1478
  %v1508 = vmul.f32 %v1454, %v1482
  %v1509 = vmul.f32 %v1455, %v1482
  %v1510 = vmul.f32 %v1456, %v1486
  %v1511 = vmul.f32 %v1457, %v1486
  %v1512 = vmul.f32 %v1458, %v1490
  %v1513 = vmul.f32 %v1459, %v1490
  %v1514 = vmul.f32 %v1460, %v1494
  %v1515 = vmul.f32 %v1461, %v1494
  %v1516 = vmul.f32 %v1462, %v1498
  %v1517 = vmul.f32 %v1463, %v1498
  %1518 = vset.pattern.permute.xlu0 58
  %1519 = vperm.xlu0 %1518, %v1145
  %v1520 = vpop.permute.xlu0 %1519
  %1522 = vset.pattern.permute.xlu0 58
  %1523 = vperm.xlu0 %1522, %v1146
  %v1524 = vpop.permute.xlu0 %1523
  %1526 = vset.pattern.permute.xlu0 58
  %1527 = vperm.xlu0 %1526, %v1147
  %v1528 = vpop.permute.xlu0 %1527
  %1530 = vset.pattern.permute.xlu0 58
  %1531 = vperm.xlu0 %1530, %v1148
  %v1532 = vpop.permute.xlu0 %1531
  %1534 = vset.pattern.permute.xlu0 58
  %1535 = vperm.xlu0 %1534, %v1149
  %v1536 = vpop.permute.xlu0 %1535
  %1538 = vset.pattern.permute.xlu0 58
  %1539 = vperm.xlu0 %1538, %v1150
  %v1540 = vpop.permute.xlu0 %1539
  %1542 = vset.pattern.permute.xlu0 58
  %1543 = vperm.xlu0 %1542, %v1151
  %v1544 = vpop.permute.xlu0 %1543
  %1546 = vset.pattern.permute.xlu0 58
  %1547 = vperm.xlu0 %1546, %v1152
  %v1548 = vpop.permute.xlu0 %1547
  %1550 = vset.pattern.permute.xlu0 58
  %1551 = vperm.xlu0 %1550, %v1153
  %v1552 = vpop.permute.xlu0 %1551
  %v1554 = vadd.f32 %v1500, %v1520
  %v1555 = vadd.f32 %v1501, %v1520
  %v1556 = vadd.f32 %v1502, %v1524
  %v1557 = vadd.f32 %v1503, %v1524
  %v1558 = vadd.f32 %v1504, %v1528
  %v1559 = vadd.f32 %v1505, %v1528
  %v1560 = vadd.f32 %v1506, %v1532
  %v1561 = vadd.f32 %v1507, %v1532
  %v1562 = vadd.f32 %v1508, %v1536
  %v1563 = vadd.f32 %v1509, %v1536
  %v1564 = vadd.f32 %v1510, %v1540
  %v1565 = vadd.f32 %v1511, %v1540
  %v1566 = vadd.f32 %v1512, %v1544
  %v1567 = vadd.f32 %v1513, %v1544
  %v1568 = vadd.f32 %v1514, %v1548
  %v1569 = vadd.f32 %v1515, %v1548
  %v1570 = vadd.f32 %v1516, %v1552
  %v1571 = vadd.f32 %v1517, %v1552
  %v1572 = vmul.f32 %v1554, 0.5
  %v1573 = vmul.f32 %v1555, 0.5
  %v1574 = vmul.f32 %v1556, 0.5
  %v1575 = vmul.f32 %v1557, 0.5
  %v1576 = vmul.f32 %v1558, 0.5
  %v1577 = vmul.f32 %v1559, 0.5
  %v1578 = vmul.f32 %v1560, 0.5
  %v1579 = vmul.f32 %v1561, 0.5
  %v1580 = vmul.f32 %v1562, 0.5
  %v1581 = vmul.f32 %v1563, 0.5
  %v1582 = vmul.f32 %v1564, 0.5
  %v1583 = vmul.f32 %v1565, 0.5
  %v1584 = vmul.f32 %v1566, 0.5
  %v1585 = vmul.f32 %v1567, 0.5
  %v1586 = vmul.f32 %v1568, 0.5
  %v1587 = vmul.f32 %v1569, 0.5
  %v1588 = vmul.f32 %v1570, 0.5
  %v1589 = vmul.f32 %v1571, 0.5
  %v1590 = vmul.f32 %v1554, %v395
  %v1591 = vmul.f32 %v1555, %v395
  %v1592 = vmul.f32 %v1556, %v395
  %v1593 = vmul.f32 %v1557, %v395
  %v1594 = vmul.f32 %v1558, %v395
  %v1595 = vmul.f32 %v1559, %v395
  %v1596 = vmul.f32 %v1560, %v395
  %v1597 = vmul.f32 %v1561, %v395
  %v1598 = vmul.f32 %v1562, %v395
  %v1599 = vmul.f32 %v1563, %v395
  %v1600 = vmul.f32 %v1564, %v395
  %v1601 = vmul.f32 %v1565, %v395
  %v1602 = vmul.f32 %v1566, %v395
  %v1603 = vmul.f32 %v1567, %v395
  %v1604 = vmul.f32 %v1568, %v395
  %v1605 = vmul.f32 %v1569, %v395
  %v1606 = vmul.f32 %v1570, %v395
  %v1607 = vmul.f32 %v1571, %v395
  %v1608 = verf.f32.pop %v1590
  %v1609 = verf.f32.pop %v1591
  %v1610 = verf.f32.pop %v1592
  %v1611 = verf.f32.pop %v1593
  %v1612 = verf.f32.pop %v1594
  %v1613 = verf.f32.pop %v1595
  %v1614 = verf.f32.pop %v1596
  %v1615 = verf.f32.pop %v1597
  %v1616 = verf.f32.pop %v1598
  %v1617 = verf.f32.pop %v1599
  %v1618 = verf.f32.pop %v1600
  %v1619 = verf.f32.pop %v1601
  %v1620 = verf.f32.pop %v1602
  %v1621 = verf.f32.pop %v1603
  %v1622 = verf.f32.pop %v1604
  %v1623 = verf.f32.pop %v1605
  %v1624 = verf.f32.pop %v1606
  %v1625 = verf.f32.pop %v1607
  %v1626 = vadd.f32 %v1608, 1.0
  %v1627 = vadd.f32 %v1609, 1.0
  %v1628 = vadd.f32 %v1610, 1.0
  %v1629 = vadd.f32 %v1611, 1.0
  %v1630 = vadd.f32 %v1612, 1.0
  %v1631 = vadd.f32 %v1613, 1.0
  %v1632 = vadd.f32 %v1614, 1.0
  %v1633 = vadd.f32 %v1615, 1.0
  %v1634 = vadd.f32 %v1616, 1.0
  %v1635 = vadd.f32 %v1617, 1.0
  %v1636 = vadd.f32 %v1618, 1.0
  %v1637 = vadd.f32 %v1619, 1.0
  %v1638 = vadd.f32 %v1620, 1.0
  %v1639 = vadd.f32 %v1621, 1.0
  %v1640 = vadd.f32 %v1622, 1.0
  %v1641 = vadd.f32 %v1623, 1.0
  %v1642 = vadd.f32 %v1624, 1.0
  %v1643 = vadd.f32 %v1625, 1.0
  %v1644 = vmul.f32 %v1572, %v1626
  %v1645 = vmul.f32 %v1573, %v1627
  %v1646 = vmul.f32 %v1574, %v1628
  %v1647 = vmul.f32 %v1575, %v1629
  %v1648 = vmul.f32 %v1576, %v1630
  %v1649 = vmul.f32 %v1577, %v1631
  %v1650 = vmul.f32 %v1578, %v1632
  %v1651 = vmul.f32 %v1579, %v1633
  %v1652 = vmul.f32 %v1580, %v1634
  %v1653 = vmul.f32 %v1581, %v1635
  %v1654 = vmul.f32 %v1582, %v1636
  %v1655 = vmul.f32 %v1583, %v1637
  %v1656 = vmul.f32 %v1584, %v1638
  %v1657 = vmul.f32 %v1585, %v1639
  %v1658 = vmul.f32 %v1586, %v1640
  %v1659 = vmul.f32 %v1587, %v1641
  %v1660 = vmul.f32 %v1588, %v1642
  %v1661 = vmul.f32 %v1589, %v1643
  %v1662 = vld [vmem:[%s1 + $0xb0] sm:$0xff]
  %1664 = vset.pattern.permute.xlu0 70
  %1665 = vperm.xlu0 %1664, %v1662
  %v1666 = vpop.permute.xlu0 %1665
  %vm1668 = vcmask 572416
  %v1669 = vsel %vm1668, %v1662, 0
  %v1672 = vsel %vm1343, %v1660, 0
  %v1675 = vsel %vm1343, %v1661, 0
  %1677 = vmatprep.subr.mxu0 %v1645
  %1678 = vmatpush1.msra.mxu0 %v1644
  %1679 = vmatprep.subr.mxu0 %v1647
  %1680 = vmatpush1.msra.mxu0 %v1646
  %1681 = vmatprep.subr.mxu0 %v1649
  %1682 = vmatpush1.msra.mxu0 %v1648
  %1683 = vmatprep.subr.mxu0 %v1651
  %1684 = vmatpush1.msra.mxu0 %v1650
  %1685 = vmatprep.subr.mxu0 %v1653
  %1686 = vmatpush1.msra.mxu0 %v1652
  %1687 = vmatprep.subr.mxu0 %v1655
  %1688 = vmatpush1.msra.mxu0 %v1654
  %1689 = vmatprep.subr.mxu0 %v1657
  %1690 = vmatpush1.msra.mxu0 %v1656
  %1691 = vmatprep.subr.mxu0 %v1659
  %1692 = vmatpush1.msra.mxu0 %v1658
  %1693 = vmatprep.subr.mxu0 %v1675
  %1694 = vmatpush1.msra.mxu0 %v1672
  %1695 = vmatprep.subr.mxu0 0.0
  %1696 = vmatpush1.msra.mxu0 0.0
  %1697 = vmatprep.subr.mxu0 0.0
  %1698 = vmatpush1.msra.mxu0 0.0
  %1699 = vmatprep.subr.mxu0 0.0
  %1700 = vmatpush1.msra.mxu0 0.0
  %1701 = vmatprep.subr.mxu0 0.0
  %1702 = vmatpush1.msra.mxu0 0.0
  %1703 = vmatprep.subr.mxu0 0.0
  %1704 = vmatpush1.msra.mxu0 0.0
  %1705 = vmatprep.subr.mxu0 0.0
  %1706 = vmatpush1.msra.mxu0 0.0
  %1707 = vmatprep.subr.mxu0 0.0
  %1708 = vmatpush1.msra.mxu0 0.0
  %1709 = vmatprep.subr.mxu0 0.0
  %1710 = vmatpush1.msra.mxu0 0.0
  %1711 = vmatprep.subr.mxu0 0.0
  %1712 = vmatpush1.msra.mxu0 0.0
  %1713 = vmatprep.subr.mxu0 0.0
  %1714 = vmatpush1.msra.mxu0 0.0
  %1715 = vmatprep.subr.mxu0 0.0
  %1716 = vmatpush1.msra.mxu0 0.0
  %1717 = vmatprep.subr.mxu0 0.0
  %1718 = vmatpush1.msra.mxu0 0.0
  %1719 = vmatprep.subr.mxu0 0.0
  %1720 = vmatpush1.msra.mxu0 0.0
  %1721 = vmatprep.subr.mxu0 0.0
  %1722 = vmatpush1.msra.mxu0 0.0
  %1723 = vmatprep.subr.mxu0 0.0
  %1724 = vmatpush1.msra.mxu0 0.0
  %1725 = vmatprep.subr.mxu0 0.0
  %1726 = vmatpush1.msra.mxu0 0.0
  %1727 = vmatprep.subr.mxu0 0.0
  %1728 = vmatpush1.msra.mxu0 0.0
  %1729 = vmatprep.subr.mxu0 0.0
  %1730 = vmatpush1.msra.mxu0 0.0
  %1731 = vmatprep.subr.mxu0 0.0
  %1732 = vmatpush1.msra.mxu0 0.0
  %1733 = vmatprep.subr.mxu0 0.0
  %1734 = vmatpush1.msra.mxu0 0.0
  %1735 = vmatprep.subr.mxu0 0.0
  %1736 = vmatpush1.msra.mxu0 0.0
  %1737 = vmatprep.subr.mxu0 0.0
  %1738 = vmatpush1.msra.mxu0 0.0
  %1739 = vmatprep.subr.mxu0 0.0
  %1740 = vmatpush1.msra.mxu0 0.0
  %1741 = vmatprep.mubr.f32.mxu0 0.0
  %1742 = vmatmul.mubr.f32.gmra.mrb[0].mxu0 %v1669
  %v1743 = vpop.f32.mrb[0].mxu0
  %v1744 = vadd.f32 %v1666, %v1743
  %v1745 = vpop.f32.mrb[0].mxu0
  %v1746 = vadd.f32 %v1666, %v1745
  %1747 = vdwg.mxu0
  %v1748 = vrot.slane %v1744, 4
  %v1749 = vadd.f32 %v1744, %v1748
  %v1750 = vrot.slane %v1749, 2
  %v1751 = vadd.f32 %v1749, %v1750
  %v1752 = vrot.slane %v1751, 1
  %v1753 = vadd.f32 %v1751, %v1752
  %v1754 = vrot.slane %v1746, 4
  %v1755 = vadd.f32 %v1746, %v1754
  %v1756 = vrot.slane %v1755, 2
  %v1757 = vadd.f32 %v1755, %v1756
  %v1758 = vrot.slane %v1757, 1
  %v1759 = vadd.f32 %v1757, %v1758
  %v1760 = vmul.f32 %v1753, %v526
  %v1761 = vmul.f32 %v1759, %v526
  %v1762 = vmul.f32 %v1744, %v1744
  %v1763 = vmul.f32 %v1746, %v1746
  %v1764 = vrot.slane %v1762, 4
  %v1765 = vadd.f32 %v1762, %v1764
  %v1766 = vrot.slane %v1765, 2
  %v1767 = vadd.f32 %v1765, %v1766
  %v1768 = vrot.slane %v1767, 1
  %v1769 = vadd.f32 %v1767, %v1768
  %v1770 = vrot.slane %v1763, 4
  %v1771 = vadd.f32 %v1763, %v1770
  %v1772 = vrot.slane %v1771, 2
  %v1773 = vadd.f32 %v1771, %v1772
  %v1774 = vrot.slane %v1773, 1
  %v1775 = vadd.f32 %v1773, %v1774
  %v1776 = vmul.f32 %v1769, %v526
  %v1777 = vmul.f32 %v1775, %v526
  %v1778 = vmul.f32 %v1760, %v1760
  %v1779 = vmul.f32 %v1761, %v1761
  %v1780 = vsub.f32 %v1776, %v1778
  %v1781 = vsub.f32 %v1777, %v1779
  %v1782 = vsub.f32 %v1744, %v1760
  %v1783 = vsub.f32 %v1746, %v1761
  %v1784 = vadd.f32 %v1780, 1e-05
  %v1785 = vadd.f32 %v1781, 1e-05
  %v1786 = vrsqrt.pop %v1784
  %v1787 = vrsqrt.pop %v1785
  %v1788 = vmul.f32 %v1782, %v1786
  %v1789 = vmul.f32 %v1783, %v1787
  %1790 = vset.pattern.permute.xlu0 71
  %1791 = vperm.xlu0 %1790, %v1662
  %v1792 = vpop.permute.xlu0 %1791
  %v1794 = vmul.f32 %v1788, %v1792
  %v1795 = vmul.f32 %v1789, %v1792
  %1796 = vset.pattern.permute.xlu0 72
  %1797 = vperm.xlu0 %1796, %v1662
  %v1798 = vpop.permute.xlu0 %1797
  %v1800 = vadd.f32 %v1794, %v1798
  %v1801 = vadd.f32 %v1795, %v1798
  %v1802 = vmul.f32 %v1800, 0.5
  %v1803 = vmul.f32 %v1801, 0.5
  %v1804 = vmul.f32 %v1800, %v395
  %v1805 = vmul.f32 %v1801, %v395
  %v1806 = verf.f32.pop %v1804
  %v1807 = verf.f32.pop %v1805
  %v1808 = vadd.f32 %v1806, 1.0
  %v1809 = vadd.f32 %v1807, 1.0
  %v1810 = vmul.f32 %v1802, %v1808
  %v1811 = vmul.f32 %v1803, %v1809
  %v1812 = vadd.f32 %v1143, %v1810
  %v1813 = vadd.f32 %v1144, %v1811
  %1814 = vst [vmem:[%s2] sm:$0xff] %v1812
  %1815 = vst [vmem:[%s2 + $0x8] sm:$0xff] %v1813
  // Predicated region
  $region10: #{_hnn_forward_impl.1} parent=0 // pred_check
    _
  $region11: #{_hnn_forward_impl.1} parent=0 // pred_check_branch
    %1817 = sbr.rel (0) target = $region13
  $region12: #{_hnn_forward_impl.1} parent=0 // pred_region
    _
  $region13: #{_hnn_forward_impl.1} parent=0 // pred_fallthru
    _
  // Predicated region
  $region14: #{_hnn_forward_impl.1} parent=0 // pred_check
    _
  $region15: #{_hnn_forward_impl.1} parent=0 // pred_check_branch
    %1819 = sbr.rel (0) target = $region17
  $region16: #{_hnn_forward_impl.1} parent=0 // pred_region
    _
  $region17: #{_hnn_forward_impl.1} parent=0 // pred_fallthru
    _

</llo_original>
